<compile_context>
chip_gen: v7x
topology: tpu7x:2x2x1
jax: 0.10.0
libtpu: 0.0.40
codegen_flags: <defaults>
</compile_context>

<pallas_src>
import jax
import jax.numpy as jnp
from jax import lax
from jax.experimental import pallas as pl
from jax.experimental.pallas import tpu as pltpu

LEAKY_SLOPE = 0.01                 # F.leaky_relu default negative_slope
VMEM_LIMIT = 48 * 1024 * 1024      # safe on v7x (64 MiB physical), ample on v5e/v6e


def _round_up(n, m):
    return ((n + m - 1) // m) * m


# ---------------------------------------------------------------------------
# Kernel 1: GCNConv   h = leaky_relu( (A_norm @ X) @ W1 + b1 )
#   grid = (row tiles [parallel], A-column reduction tiles [arbitrary])
#   The k axis collapses to a single full row-stripe for n_pad <= 4096.
# ---------------------------------------------------------------------------
def gcn_conv_kernel(a_ref, x_ref, w1_ref, b1_ref, h_ref, acc_ref):
    k = pl.program_id(1)

    @pl.when(k == 0)
    def _():
        acc_ref[...] = jnp.zeros_like(acc_ref)

    # bf16 A tile (dominant HBM stream) @ bf16 x tile -> f32 accumulate.
    acc_ref[...] += jnp.dot(a_ref[...], x_ref[...],
                            preferred_element_type=jnp.float32)

    @pl.when(k == pl.num_programs(1) - 1)
    def _():
        ax = acc_ref[...]
        if ax.shape[1] == 1:
            # C_in == 1: K=1 outer product == VPU broadcast multiply (skip the MXU).
            h = ax * w1_ref[...]
        else:
            h = jnp.dot(ax, w1_ref[...], preferred_element_type=jnp.float32)
        h = h + b1_ref[...]
        # Dropout(p=0) == identity; leaky_relu in f32 on the VPU (v5e-safe).
        h_ref[...] = jnp.where(h > 0, h, LEAKY_SLOPE * h)


# ---------------------------------------------------------------------------
# Kernel 2: edge gather + Linear(10, 2), lane-dense output (2, e_pad)
#   y = h[edge_index[1]], z = h[edge_index[0]], out = cat(y, z) @ W2.T + b2
# ---------------------------------------------------------------------------
_UNROLL = 8


def edge_mlp_kernel(ei0_ref, ei1_ref, h_ref, w2y_ref, w2z_ref, b2_ref,
                    out_ref, ybuf_ref, zbuf_ref):
    te = ybuf_ref.shape[0]
    e0 = pl.program_id(0) * te

    # 2*te single-row copies, manually 8x unrolled so the dependent
    # SMEM-load -> dynamic-vld -> vst chains interleave instead of serializing.
    def gather8(i8, carry):
        row0 = pl.multiple_of(i8 * _UNROLL, _UNROLL)
        for u in range(_UNROLL):              # static unroll
            s = ei0_ref[e0 + row0 + u]        # z = h[edge_index[0]]
            d = ei1_ref[e0 + row0 + u]        # y = h[edge_index[1]]
            zbuf_ref[pl.ds(row0 + u, 1), :] = h_ref[pl.ds(s, 1), :]
            ybuf_ref[pl.ds(row0 + u, 1), :] = h_ref[pl.ds(d, 1), :]
        return carry

    lax.fori_loop(0, te // _UNROLL, gather8, 0)

    # out.T[c, e] = sum_j W2[c, j]*y[e, j] + W2[c, 5+j]*z[e, j] + b2[c]
    # The tiny (2,5)@(5,te) MXU dots also perform the transpose that keeps the
    # output block lane-dense (edges on the lane axis).
    out_ref[...] = (
        jnp.dot(w2y_ref[...], ybuf_ref[...].T, preferred_element_type=jnp.float32)
        + jnp.dot(w2z_ref[...], zbuf_ref[...].T, preferred_element_type=jnp.float32)
        + b2_ref[...])


# ---------------------------------------------------------------------------
# Traced glue: dense GCN-normalized adjacency A[target, source], built in bf16.
#   add_remaining_self_loops semantics with edge_weight=None: pre-existing self
#   loops dropped, exactly one weight-1 self loop per node.
# ---------------------------------------------------------------------------
def _normalized_adjacency_bf16(edge_index_orig, n, n_pad):
    src = edge_index_orig[0].astype(jnp.int32)
    dst = edge_index_orig[1].astype(jnp.int32)
    loop = jnp.arange(n, dtype=jnp.int32)
    w_e = (src != dst).astype(jnp.float32)          # drop pre-existing self loops

    deg = jnp.zeros((n_pad,), jnp.float32).at[dst].add(w_e).at[loop].add(1.0)
    dinv = jnp.where(deg > 0, lax.rsqrt(deg), 0.0)

    rows = jnp.concatenate([dst, loop])
    cols = jnp.concatenate([src, loop])
    vals = jnp.concatenate([dinv[dst] * w_e * dinv[src],
                            dinv[loop] * dinv[loop]]).astype(jnp.bfloat16)
    # Single scatter-add into bf16 zeros: one N^2*2B write instead of f32 write/read + cast.
    return jnp.zeros((n_pad, n_pad), jnp.bfloat16).at[rows, cols].add(vals)


@jax.jit
def net_conv_forward(x, edge_index, edge_index_orig, params):
    """Inference path (flag != 'Training'): dropout_adj(p=0) keeps all edges."""
    N, c_in = x.shape
    E = edge_index.shape[1]

    # ---- kernel-1 tiling: big row tiles; collapse the k reduction whenever the full
    # (tile_m, n_pad) bf16 row stripe stays <= 8 MiB (16 MiB double-buffered). ----------
    tile_m = 1024 if N > 1024 else _round_up(max(N, 8), 256)
    n_pad = _round_up(N, tile_m)
    tile_k = n_pad if n_pad <= 4096 else 1024

    a = _normalized_adjacency_bf16(edge_index_orig, N, n_pad)
    x_pad = jnp.zeros((n_pad, c_in), jnp.bfloat16).at[:N, :].set(x.astype(jnp.bfloat16))

    w1 = params["w1"].reshape(c_in, 5).astype(jnp.float32)
    b1 = params["b1"].reshape(1, 5).astype(jnp.float32)

    h = pl.pallas_call(
        gcn_conv_kernel,
        out_shape=jax.ShapeDtypeStruct((n_pad, 5), jnp.float32),
        grid_spec=pltpu.PrefetchScalarGridSpec(
            num_scalar_prefetch=0,
            grid=(n_pad // tile_m, n_pad // tile_k),
            in_specs=[
                pl.BlockSpec((tile_m, tile_k), lambda i, k: (i, k)),  # A tile (bf16)
                pl.BlockSpec((tile_k, c_in), lambda i, k: (k, 0)),    # x tile (bf16)
                pl.BlockSpec((c_in, 5), lambda i, k: (0, 0)),         # W1
                pl.BlockSpec((1, 5), lambda i, k: (0, 0)),            # b1
            ],
            out_specs=pl.BlockSpec((tile_m, 5), lambda i, k: (i, 0)),
            scratch_shapes=[pltpu.VMEM((tile_m, c_in), jnp.float32)],
        ),
        compiler_params=pltpu.CompilerParams(
            dimension_semantics=("parallel", "arbitrary"),
            vmem_limit_bytes=VMEM_LIMIT,
        ),
    )(a, x_pad, w1, b1)

    # ---- kernel 2: prediction-edge gather + Linear(10, 2) ----------------------------
    te = min(512, _round_up(E, 128))
    e_pad = _round_up(E, te)

    # TODO(synk): for very large E, stream (te,) index tiles per grid step instead of
    #             scalar-prefetching the whole index arrays into SMEM.
    ei0 = jnp.zeros((e_pad,), jnp.int32).at[:E].set(edge_index[0].astype(jnp.int32))
    ei1 = jnp.zeros((e_pad,), jnp.int32).at[:E].set(edge_index[1].astype(jnp.int32))

    w2 = params["w2"].reshape(2, 10).astype(jnp.float32)
    w2y = w2[:, :5]                     # pairs with y = h[edge_index[1]]
    w2z = w2[:, 5:]                     # pairs with z = h[edge_index[0]]
    b2 = params["b2"].reshape(2, 1).astype(jnp.float32)

    # TODO(synk): for n_pad >~ 32K the lane-padded resident h (n_pad x 128 lanes f32,
    #             double-buffered) approaches v7x's 64 MiB VMEM; switch to a single-buffered
    #             / lane-packed h layout there.
    out_t = pl.pallas_call(
        edge_mlp_kernel,
        out_shape=jax.ShapeDtypeStruct((2, e_pad), jnp.float32),   # lane-dense
        grid_spec=pltpu.PrefetchScalarGridSpec(
            num_scalar_prefetch=2,            # ei0, ei1 -> SMEM
            grid=(e_pad // te,),
            in_specs=[
                pl.BlockSpec((n_pad, 5), lambda e, i0, i1: (0, 0)),  # h resident in VMEM
                pl.BlockSpec((2, 5), lambda e, i0, i1: (0, 0)),
                pl.BlockSpec((2, 5), lambda e, i0, i1: (0, 0)),
                pl.BlockSpec((2, 1), lambda e, i0, i1: (0, 0)),
            ],
            out_specs=pl.BlockSpec((2, te), lambda e, i0, i1: (0, e)),
            scratch_shapes=[pltpu.VMEM((te, 5), jnp.float32),
                            pltpu.VMEM((te, 5), jnp.float32)],
        ),
        compiler_params=pltpu.CompilerParams(
            dimension_semantics=("parallel",),
            vmem_limit_bytes=VMEM_LIMIT,
        ),
    )(ei0, ei1, h, w2y, w2z, b2)

    out = out_t[:, :E].T                # slice padded edge columns off BEFORE transposing
    # Module returns (x, x2) with x = x2
    return out, out


# ---------------------------------------------------------------------------
# Pure-JAX mirror of the kernel math (same bf16 adjacency) for a sanity check.
# ---------------------------------------------------------------------------
@jax.jit
def net_conv_reference(x, edge_index, edge_index_orig, params):
    N, c_in = x.shape
    tile_m = 1024 if N > 1024 else _round_up(max(N, 8), 256)
    n_pad = _round_up(N, tile_m)
    hi = lax.Precision.HIGHEST

    a = _normalized_adjacency_bf16(edge_index_orig, N, n_pad).astype(jnp.float32)
    x_pad = jnp.zeros((n_pad, c_in), jnp.bfloat16).at[:N, :].set(
        x.astype(jnp.bfloat16)).astype(jnp.float32)

    ax = jnp.dot(a, x_pad, precision=hi)
    h = jnp.dot(ax, params["w1"].reshape(c_in, 5).astype(jnp.float32), precision=hi)
    h = h + params["b1"].reshape(1, 5).astype(jnp.float32)
    h = jnp.where(h > 0, h, LEAKY_SLOPE * h)

    y = h[edge_index[1], :]
    z = h[edge_index[0], :]
    cat = jnp.concatenate([y, z], axis=1)
    w2 = params["w2"].reshape(2, 10).astype(jnp.float32)
    return jnp.dot(cat, w2.T, precision=hi) + params["b2"].reshape(1, 2).astype(jnp.float32)


def init_params(key, input_size=1):
    k1, k2, k3, k4 = jax.random.split(key, 4)
    w1 = jax.random.normal(k1, (input_size, 5), jnp.float32) * 0.1   # GCNConv weight
    b1 = jax.random.normal(k2, (5,), jnp.float32) * 0.1
    w2 = jax.random.normal(k3, (2, 10), jnp.float32) * 0.1           # Linear(10, 2)
    b2 = jax.random.normal(k4, (2,), jnp.float32) * 0.1
    return {"w1": w1, "b1": b1, "w2": w2, "b2": b2}


if __name__ == "__main__":
    N = 256          # nodes
    C_in = 1         # input_size
    E_orig = 1024    # message-passing edges (data.edge_index_orig)
    E = 512          # prediction edges (data.edge_index)

    key = jax.random.PRNGKey(0)
    kx, ke1, ke2, kp = jax.random.split(key, 4)

    x = jax.random.normal(kx, (N, C_in), jnp.float32)
    edge_index_orig = jax.random.randint(ke1, (2, E_orig), 0, N, jnp.int32)
    edge_index = jax.random.randint(ke2, (2, E), 0, N, jnp.int32)
    params = init_params(kp, input_size=C_in)

    out, out2 = net_conv_forward(x, edge_index, edge_index_orig, params)
    jax.block_until_ready((out, out2))
    assert out.shape == (E, 2) and out.dtype == jnp.float32

    ref = net_conv_reference(x, edge_index, edge_index_orig, params)
    jax.block_until_ready(ref)
    max_err = float(jnp.max(jnp.abs(out - ref)))
    assert max_err < 1e-2, f"max abs err vs reference: {max_err}"

    print("KERNEL_OK")
</pallas_src>

<mosaic_0001>
module attributes {stable_mosaic.version = 11 : i64} {
  func.func private @main(%arg0: i32) attributes {dimension_semantics = [#tpu.dimension_semantics<core_parallel>], iteration_bounds = array<i64: 2>, tpu.core_type = #tpu.core_type<sc_scalar_subcore>, window_params = []} {
    return
  }
}

module attributes {stable_mosaic.version = 11 : i64} {
  func.func private @main(%arg0: i32) attributes {dimension_semantics = [#tpu.dimension_semantics<core_parallel>], iteration_bounds = array<i64: 2>, tpu.core_type = #tpu.core_type<sc_scalar_subcore>, window_params = []} {
    return
  }
}

module attributes {stable_mosaic.version = 11 : i64} {
  func.func @gcn_conv_kernel(%arg0: i32, %arg1: i32, %arg2: memref<256x256xbf16, #tpu.memory_space<vmem>>, %arg3: memref<256x1xbf16, #tpu.memory_space<vmem>>, %arg4: memref<1x5xf32, #tpu.memory_space<vmem>>, %arg5: memref<1x5xf32, #tpu.memory_space<vmem>>, %arg6: memref<256x5xf32, #tpu.memory_space<vmem>>, %arg7: memref<256x1xf32, #tpu.memory_space<vmem>>) attributes {dimension_semantics = [#tpu.dimension_semantics<parallel>, #tpu.dimension_semantics<arbitrary>], iteration_bounds = array<i64: 1, 1>, scalar_prefetch = 0 : i64, scratch_operands = 1 : i64, tpu.core_type = #tpu.core_type<tc>, window_params = [{transform_indices = @transform_0, window_bounds = array<i64: 256, 256>}, {transform_indices = @transform_1, window_bounds = array<i64: 256, 1>}, {pipeline_mode = #tpu.pipeline_mode<synchronous>, transform_indices = @transform_2, window_bounds = array<i64: 1, 5>}, {pipeline_mode = #tpu.pipeline_mode<synchronous>, transform_indices = @transform_3, window_bounds = array<i64: 1, 5>}, {transform_indices = @transform_4, window_bounds = array<i64: 256, 5>}]} {
    %c0_i32 = arith.constant 0 : i32
    %0 = arith.cmpi eq, %arg1, %c0_i32 : i32
    %1 = arith.extui %0 : i1 to i32
    %c0_i32_0 = arith.constant 0 : i32
    %2 = arith.cmpi ne, %1, %c0_i32_0 : i32
    scf.if %2 {
      %cst_10 = arith.constant 0.000000e+00 : f32
      %12 = vector.broadcast %cst_10 : f32 to vector<256x1xf32>
      %c0_11 = arith.constant 0 : index
      %c0_12 = arith.constant 0 : index
      %13 = vector.load %arg7[%c0_11, %c0_12] : memref<256x1xf32, #tpu.memory_space<vmem>>, vector<256x1xf32>
      tpu.vector_store %arg7[%c0_11, %c0_12], %12 {strides = array<i32>} : memref<256x1xf32, #tpu.memory_space<vmem>>, vector<256x1xf32>,
    } else {
    }
    %c0 = arith.constant 0 : index
    %c0_1 = arith.constant 0 : index
    %3 = vector.load %arg7[%c0, %c0_1] : memref<256x1xf32, #tpu.memory_space<vmem>>, vector<256x1xf32>
    %c0_2 = arith.constant 0 : index
    %c0_3 = arith.constant 0 : index
    %4 = vector.load %arg2[%c0_2, %c0_3] : memref<256x256xbf16, #tpu.memory_space<vmem>>, vector<256x256xbf16>
    %c0_4 = arith.constant 0 : index
    %c0_5 = arith.constant 0 : index
    %5 = vector.load %arg3[%c0_4, %c0_5] : memref<256x1xbf16, #tpu.memory_space<vmem>>, vector<256x1xbf16>
    %cst = arith.constant dense<0.000000e+00> : vector<256x1xf32>
    %6 = tpu.matmul %4, %5, %cst {dimension_numbers = #tpu.dot_dimension_numbers<[1], [0], [0], [1], [0, 0, 1, 1], [], []>} : vector<256x256xbf16>, vector<256x1xbf16>, vector<256x1xf32> -> vector<256x1xf32>
    %7 = arith.addf %3, %6 : vector<256x1xf32>
    %c0_6 = arith.constant 0 : index
    %c0_7 = arith.constant 0 : index
    %8 = vector.load %arg7[%c0_6, %c0_7] : memref<256x1xf32, #tpu.memory_space<vmem>>, vector<256x1xf32>
    tpu.vector_store %arg7[%c0_6, %c0_7], %7 {strides = array<i32>} : memref<256x1xf32, #tpu.memory_space<vmem>>, vector<256x1xf32>,
    %c0_i32_8 = arith.constant 0 : i32
    %9 = arith.cmpi eq, %arg1, %c0_i32_8 : i32
    %10 = arith.extui %9 : i1 to i32
    %c0_i32_9 = arith.constant 0 : i32
    %11 = arith.cmpi ne, %10, %c0_i32_9 : i32
    scf.if %11 {
      %c0_10 = arith.constant 0 : index
      %c0_11 = arith.constant 0 : index
      %12 = vector.load %arg7[%c0_10, %c0_11] : memref<256x1xf32, #tpu.memory_space<vmem>>, vector<256x1xf32>
      %c0_12 = arith.constant 0 : index
      %c0_13 = arith.constant 0 : index
      %13 = vector.load %arg4[%c0_12, %c0_13] : memref<1x5xf32, #tpu.memory_space<vmem>>, vector<1x5xf32>
      %14 = vector.broadcast %12 : vector<256x1xf32> to vector<256x5xf32>
      %15 = vector.broadcast %13 : vector<1x5xf32> to vector<256x5xf32>
      %16 = arith.mulf %14, %15 : vector<256x5xf32>
      %c0_14 = arith.constant 0 : index
      %c0_15 = arith.constant 0 : index
      %17 = vector.load %arg5[%c0_14, %c0_15] : memref<1x5xf32, #tpu.memory_space<vmem>>, vector<1x5xf32>
      %18 = vector.broadcast %17 : vector<1x5xf32> to vector<256x5xf32>
      %19 = arith.addf %16, %18 : vector<256x5xf32>
      %cst_16 = arith.constant 0.000000e+00 : f32
      %20 = vector.broadcast %cst_16 : f32 to vector<256x5xf32>
      %21 = arith.cmpf ogt, %19, %20 : vector<256x5xf32>
      %cst_17 = arith.constant 0.00999999977 : f32
      %22 = vector.broadcast %cst_17 : f32 to vector<256x5xf32>
      %23 = arith.mulf %22, %19 : vector<256x5xf32>
      %24 = arith.select %21, %19, %23 : vector<256x5xi1>, vector<256x5xf32>
      %c0_18 = arith.constant 0 : index
      %c0_19 = arith.constant 0 : index
      %25 = vector.load %arg6[%c0_18, %c0_19] : memref<256x5xf32, #tpu.memory_space<vmem>>, vector<256x5xf32>
      tpu.vector_store %arg6[%c0_18, %c0_19], %24 {strides = array<i32>} : memref<256x5xf32, #tpu.memory_space<vmem>>, vector<256x5xf32>,
    } else {
    }
    return
  }
  func.func @transform_0(%arg0: i32, %arg1: i32) -> (i32, i32) {
    %c0_i32 = arith.constant 0 : i32
    return %arg0, %arg1 : i32, i32
  }
  func.func @transform_1(%arg0: i32, %arg1: i32) -> (i32, i32) {
    %c0_i32 = arith.constant 0 : i32
    %c0_i32_0 = arith.constant 0 : i32
    return %arg1, %c0_i32 : i32, i32
  }
  func.func @transform_2(%arg0: i32, %arg1: i32) -> (i32, i32) {
    %c0_i32 = arith.constant 0 : i32
    %c0_i32_0 = arith.constant 0 : i32
    %c0_i32_1 = arith.constant 0 : i32
    return %c0_i32, %c0_i32_0 : i32, i32
  }
  func.func @transform_3(%arg0: i32, %arg1: i32) -> (i32, i32) {
    %c0_i32 = arith.constant 0 : i32
    %c0_i32_0 = arith.constant 0 : i32
    %c0_i32_1 = arith.constant 0 : i32
    return %c0_i32, %c0_i32_0 : i32, i32
  }
  func.func @transform_4(%arg0: i32, %arg1: i32) -> (i32, i32) {
    %c0_i32 = arith.constant 0 : i32
    %c0_i32_0 = arith.constant 0 : i32
    return %arg0, %c0_i32 : i32, i32
  }
}

module attributes {stable_mosaic.version = 11 : i64} {
  func.func @edge_mlp_kernel(%arg0: i32, %arg1: memref<512xi32, #tpu.memory_space<smem>>, %arg2: memref<512xi32, #tpu.memory_space<smem>>, %arg3: memref<256x5xf32, #tpu.memory_space<vmem>>, %arg4: memref<2x5xf32, #tpu.memory_space<vmem>>, %arg5: memref<2x5xf32, #tpu.memory_space<vmem>>, %arg6: memref<2x1xf32, #tpu.memory_space<vmem>>, %arg7: memref<2x512xf32, #tpu.memory_space<vmem>>, %arg8: memref<512x5xf32, #tpu.memory_space<vmem>>, %arg9: memref<512x5xf32, #tpu.memory_space<vmem>>) attributes {dimension_semantics = [#tpu.dimension_semantics<parallel>], iteration_bounds = array<i64: 1>, scalar_prefetch = 2 : i64, scratch_operands = 2 : i64, tpu.core_type = #tpu.core_type<tc>, window_params = [{pipeline_mode = #tpu.pipeline_mode<synchronous>, transform_indices = @transform_0, window_bounds = array<i64: 256, 5>}, {pipeline_mode = #tpu.pipeline_mode<synchronous>, transform_indices = @transform_1, window_bounds = array<i64: 2, 5>}, {pipeline_mode = #tpu.pipeline_mode<synchronous>, transform_indices = @transform_2, window_bounds = array<i64: 2, 5>}, {pipeline_mode = #tpu.pipeline_mode<synchronous>, transform_indices = @transform_3, window_bounds = array<i64: 2, 1>}, {transform_indices = @transform_4, window_bounds = array<i64: 2, 512>}]} {
    %c512_i32 = arith.constant 512 : i32
    %0 = arith.muli %arg0, %c512_i32 : i32
    %c0_i32 = arith.constant 0 : i32
    %c64_i32 = arith.constant 64 : i32
    %1 = arith.addi %c0_i32, %c64_i32 : i32
    %c1_i32 = arith.constant 1 : i32
    scf.for %arg10 = %c0_i32 to %1 step %c1_i32  : i32 {
      %c8_i32 = arith.constant 8 : i32
      %15 = arith.muli %arg10, %c8_i32 : i32
      %16 = tpu.assume_multiple %15, 8 : i32
      %17 = arith.addi %0, %16 : i32
      %c0_i32_13 = arith.constant 0 : i32
      %18 = arith.addi %17, %c0_i32_13 : i32
      %19 = arith.index_cast %18 : i32 to index
      %20 = memref.load %arg1[%19] : memref<512xi32, #tpu.memory_space<smem>>
      %21 = arith.addi %0, %16 : i32
      %c0_i32_14 = arith.constant 0 : i32
      %22 = arith.addi %21, %c0_i32_14 : i32
      %23 = arith.index_cast %22 : i32 to index
      %24 = memref.load %arg2[%23] : memref<512xi32, #tpu.memory_space<smem>>
      %25 = arith.index_cast %20 : i32 to index
      %c0_15 = arith.constant 0 : index
      %26 = vector.load %arg3[%25, %c0_15] : memref<256x5xf32, #tpu.memory_space<vmem>>, vector<1x5xf32>
      %c0_i32_16 = arith.constant 0 : i32
      %27 = arith.addi %16, %c0_i32_16 : i32
      %28 = arith.index_cast %27 : i32 to index
      %c0_17 = arith.constant 0 : index
      %29 = vector.load %arg9[%28, %c0_17] : memref<512x5xf32, #tpu.memory_space<vmem>>, vector<1x5xf32>
      tpu.vector_store %arg9[%28, %c0_17], %26 {strides = array<i32>} : memref<512x5xf32, #tpu.memory_space<vmem>>, vector<1x5xf32>,
      %30 = arith.index_cast %24 : i32 to index
      %c0_18 = arith.constant 0 : index
      %31 = vector.load %arg3[%30, %c0_18] : memref<256x5xf32, #tpu.memory_space<vmem>>, vector<1x5xf32>
      %c0_i32_19 = arith.constant 0 : i32
      %32 = arith.addi %16, %c0_i32_19 : i32
      %33 = arith.index_cast %32 : i32 to index
      %c0_20 = arith.constant 0 : index
      %34 = vector.load %arg8[%33, %c0_20] : memref<512x5xf32, #tpu.memory_space<vmem>>, vector<1x5xf32>
      tpu.vector_store %arg8[%33, %c0_20], %31 {strides = array<i32>} : memref<512x5xf32, #tpu.memory_space<vmem>>, vector<1x5xf32>,
      %35 = arith.addi %0, %16 : i32
      %c1_i32_21 = arith.constant 1 : i32
      %36 = arith.addi %35, %c1_i32_21 : i32
      %37 = arith.index_cast %36 : i32 to index
      %38 = memref.load %arg1[%37] : memref<512xi32, #tpu.memory_space<smem>>
      %39 = arith.addi %0, %16 : i32
      %c1_i32_22 = arith.constant 1 : i32
      %40 = arith.addi %39, %c1_i32_22 : i32
      %41 = arith.index_cast %40 : i32 to index
      %42 = memref.load %arg2[%41] : memref<512xi32, #tpu.memory_space<smem>>
      %43 = arith.index_cast %38 : i32 to index
      %c0_23 = arith.constant 0 : index
      %44 = vector.load %arg3[%43, %c0_23] : memref<256x5xf32, #tpu.memory_space<vmem>>, vector<1x5xf32>
      %c1_i32_24 = arith.constant 1 : i32
      %45 = arith.addi %16, %c1_i32_24 : i32
      %46 = arith.index_cast %45 : i32 to index
      %c0_25 = arith.constant 0 : index
      %47 = vector.load %arg9[%46, %c0_25] : memref<512x5xf32, #tpu.memory_space<vmem>>, vector<1x5xf32>
      tpu.vector_store %arg9[%46, %c0_25], %44 {strides = array<i32>} : memref<512x5xf32, #tpu.memory_space<vmem>>, vector<1x5xf32>,
      %48 = arith.index_cast %42 : i32 to index
      %c0_26 = arith.constant 0 : index
      %49 = vector.load %arg3[%48, %c0_26] : memref<256x5xf32, #tpu.memory_space<vmem>>, vector<1x5xf32>
      %c1_i32_27 = arith.constant 1 : i32
      %50 = arith.addi %16, %c1_i32_27 : i32
      %51 = arith.index_cast %50 : i32 to index
      %c0_28 = arith.constant 0 : index
      %52 = vector.load %arg8[%51, %c0_28] : memref<512x5xf32, #tpu.memory_space<vmem>>, vector<1x5xf32>
      tpu.vector_store %arg8[%51, %c0_28], %49 {strides = array<i32>} : memref<512x5xf32, #tpu.memory_space<vmem>>, vector<1x5xf32>,
      %53 = arith.addi %0, %16 : i32
      %c2_i32 = arith.constant 2 : i32
      %54 = arith.addi %53, %c2_i32 : i32
      %55 = arith.index_cast %54 : i32 to index
      %56 = memref.load %arg1[%55] : memref<512xi32, #tpu.memory_space<smem>>
      %57 = arith.addi %0, %16 : i32
      %c2_i32_29 = arith.constant 2 : i32
      %58 = arith.addi %57, %c2_i32_29 : i32
      %59 = arith.index_cast %58 : i32 to index
      %60 = memref.load %arg2[%59] : memref<512xi32, #tpu.memory_space<smem>>
      %61 = arith.index_cast %56 : i32 to index
      %c0_30 = arith.constant 0 : index
      %62 = vector.load %arg3[%61, %c0_30] : memref<256x5xf32, #tpu.memory_space<vmem>>, vector<1x5xf32>
      %c2_i32_31 = arith.constant 2 : i32
      %63 = arith.addi %16, %c2_i32_31 : i32
      %64 = arith.index_cast %63 : i32 to index
      %c0_32 = arith.constant 0 : index
      %65 = vector.load %arg9[%64, %c0_32] : memref<512x5xf32, #tpu.memory_space<vmem>>, vector<1x5xf32>
      tpu.vector_store %arg9[%64, %c0_32], %62 {strides = array<i32>} : memref<512x5xf32, #tpu.memory_space<vmem>>, vector<1x5xf32>,
      %66 = arith.index_cast %60 : i32 to index
      %c0_33 = arith.constant 0 : index
      %67 = vector.load %arg3[%66, %c0_33] : memref<256x5xf32, #tpu.memory_space<vmem>>, vector<1x5xf32>
      %c2_i32_34 = arith.constant 2 : i32
      %68 = arith.addi %16, %c2_i32_34 : i32
      %69 = arith.index_cast %68 : i32 to index
      %c0_35 = arith.constant 0 : index
      %70 = vector.load %arg8[%69, %c0_35] : memref<512x5xf32, #tpu.memory_space<vmem>>, vector<1x5xf32>
      tpu.vector_store %arg8[%69, %c0_35], %67 {strides = array<i32>} : memref<512x5xf32, #tpu.memory_space<vmem>>, vector<1x5xf32>,
      %71 = arith.addi %0, %16 : i32
      %c3_i32 = arith.constant 3 : i32
      %72 = arith.addi %71, %c3_i32 : i32
      %73 = arith.index_cast %72 : i32 to index
      %74 = memref.load %arg1[%73] : memref<512xi32, #tpu.memory_space<smem>>
      %75 = arith.addi %0, %16 : i32
      %c3_i32_36 = arith.constant 3 : i32
      %76 = arith.addi %75, %c3_i32_36 : i32
      %77 = arith.index_cast %76 : i32 to index
      %78 = memref.load %arg2[%77] : memref<512xi32, #tpu.memory_space<smem>>
      %79 = arith.index_cast %74 : i32 to index
      %c0_37 = arith.constant 0 : index
      %80 = vector.load %arg3[%79, %c0_37] : memref<256x5xf32, #tpu.memory_space<vmem>>, vector<1x5xf32>
      %c3_i32_38 = arith.constant 3 : i32
      %81 = arith.addi %16, %c3_i32_38 : i32
      %82 = arith.index_cast %81 : i32 to index
      %c0_39 = arith.constant 0 : index
      %83 = vector.load %arg9[%82, %c0_39] : memref<512x5xf32, #tpu.memory_space<vmem>>, vector<1x5xf32>
      tpu.vector_store %arg9[%82, %c0_39], %80 {strides = array<i32>} : memref<512x5xf32, #tpu.memory_space<vmem>>, vector<1x5xf32>,
      %84 = arith.index_cast %78 : i32 to index
      %c0_40 = arith.constant 0 : index
      %85 = vector.load %arg3[%84, %c0_40] : memref<256x5xf32, #tpu.memory_space<vmem>>, vector<1x5xf32>
      %c3_i32_41 = arith.constant 3 : i32
      %86 = arith.addi %16, %c3_i32_41 : i32
      %87 = arith.index_cast %86 : i32 to index
      %c0_42 = arith.constant 0 : index
      %88 = vector.load %arg8[%87, %c0_42] : memref<512x5xf32, #tpu.memory_space<vmem>>, vector<1x5xf32>
      tpu.vector_store %arg8[%87, %c0_42], %85 {strides = array<i32>} : memref<512x5xf32, #tpu.memory_space<vmem>>, vector<1x5xf32>,
      %89 = arith.addi %0, %16 : i32
      %c4_i32 = arith.constant 4 : i32
      %90 = arith.addi %89, %c4_i32 : i32
      %91 = arith.index_cast %90 : i32 to index
      %92 = memref.load %arg1[%91] : memref<512xi32, #tpu.memory_space<smem>>
      %93 = arith.addi %0, %16 : i32
      %c4_i32_43 = arith.constant 4 : i32
      %94 = arith.addi %93, %c4_i32_43 : i32
      %95 = arith.index_cast %94 : i32 to index
      %96 = memref.load %arg2[%95] : memref<512xi32, #tpu.memory_space<smem>>
      %97 = arith.index_cast %92 : i32 to index
      %c0_44 = arith.constant 0 : index
      %98 = vector.load %arg3[%97, %c0_44] : memref<256x5xf32, #tpu.memory_space<vmem>>, vector<1x5xf32>
      %c4_i32_45 = arith.constant 4 : i32
      %99 = arith.addi %16, %c4_i32_45 : i32
      %100 = arith.index_cast %99 : i32 to index
      %c0_46 = arith.constant 0 : index
      %101 = vector.load %arg9[%100, %c0_46] : memref<512x5xf32, #tpu.memory_space<vmem>>, vector<1x5xf32>
      tpu.vector_store %arg9[%100, %c0_46], %98 {strides = array<i32>} : memref<512x5xf32, #tpu.memory_space<vmem>>, vector<1x5xf32>,
      %102 = arith.index_cast %96 : i32 to index
      %c0_47 = arith.constant 0 : index
      %103 = vector.load %arg3[%102, %c0_47] : memref<256x5xf32, #tpu.memory_space<vmem>>, vector<1x5xf32>
      %c4_i32_48 = arith.constant 4 : i32
      %104 = arith.addi %16, %c4_i32_48 : i32
      %105 = arith.index_cast %104 : i32 to index
      %c0_49 = arith.constant 0 : index
      %106 = vector.load %arg8[%105, %c0_49] : memref<512x5xf32, #tpu.memory_space<vmem>>, vector<1x5xf32>
      tpu.vector_store %arg8[%105, %c0_49], %103 {strides = array<i32>} : memref<512x5xf32, #tpu.memory_space<vmem>>, vector<1x5xf32>,
      %107 = arith.addi %0, %16 : i32
      %c5_i32 = arith.constant 5 : i32
      %108 = arith.addi %107, %c5_i32 : i32
      %109 = arith.index_cast %108 : i32 to index
      %110 = memref.load %arg1[%109] : memref<512xi32, #tpu.memory_space<smem>>
      %111 = arith.addi %0, %16 : i32
      %c5_i32_50 = arith.constant 5 : i32
      %112 = arith.addi %111, %c5_i32_50 : i32
      %113 = arith.index_cast %112 : i32 to index
      %114 = memref.load %arg2[%113] : memref<512xi32, #tpu.memory_space<smem>>
      %115 = arith.index_cast %110 : i32 to index
      %c0_51 = arith.constant 0 : index
      %116 = vector.load %arg3[%115, %c0_51] : memref<256x5xf32, #tpu.memory_space<vmem>>, vector<1x5xf32>
      %c5_i32_52 = arith.constant 5 : i32
      %117 = arith.addi %16, %c5_i32_52 : i32
      %118 = arith.index_cast %117 : i32 to index
      %c0_53 = arith.constant 0 : index
      %119 = vector.load %arg9[%118, %c0_53] : memref<512x5xf32, #tpu.memory_space<vmem>>, vector<1x5xf32>
      tpu.vector_store %arg9[%118, %c0_53], %116 {strides = array<i32>} : memref<512x5xf32, #tpu.memory_space<vmem>>, vector<1x5xf32>,
      %120 = arith.index_cast %114 : i32 to index
      %c0_54 = arith.constant 0 : index
      %121 = vector.load %arg3[%120, %c0_54] : memref<256x5xf32, #tpu.memory_space<vmem>>, vector<1x5xf32>
      %c5_i32_55 = arith.constant 5 : i32
      %122 = arith.addi %16, %c5_i32_55 : i32
      %123 = arith.index_cast %122 : i32 to index
      %c0_56 = arith.constant 0 : index
      %124 = vector.load %arg8[%123, %c0_56] : memref<512x5xf32, #tpu.memory_space<vmem>>, vector<1x5xf32>
      tpu.vector_store %arg8[%123, %c0_56], %121 {strides = array<i32>} : memref<512x5xf32, #tpu.memory_space<vmem>>, vector<1x5xf32>,
      %125 = arith.addi %0, %16 : i32
      %c6_i32 = arith.constant 6 : i32
      %126 = arith.addi %125, %c6_i32 : i32
      %127 = arith.index_cast %126 : i32 to index
      %128 = memref.load %arg1[%127] : memref<512xi32, #tpu.memory_space<smem>>
      %129 = arith.addi %0, %16 : i32
      %c6_i32_57 = arith.constant 6 : i32
      %130 = arith.addi %129, %c6_i32_57 : i32
      %131 = arith.index_cast %130 : i32 to index
      %132 = memref.load %arg2[%131] : memref<512xi32, #tpu.memory_space<smem>>
      %133 = arith.index_cast %128 : i32 to index
      %c0_58 = arith.constant 0 : index
      %134 = vector.load %arg3[%133, %c0_58] : memref<256x5xf32, #tpu.memory_space<vmem>>, vector<1x5xf32>
      %c6_i32_59 = arith.constant 6 : i32
      %135 = arith.addi %16, %c6_i32_59 : i32
      %136 = arith.index_cast %135 : i32 to index
      %c0_60 = arith.constant 0 : index
      %137 = vector.load %arg9[%136, %c0_60] : memref<512x5xf32, #tpu.memory_space<vmem>>, vector<1x5xf32>
      tpu.vector_store %arg9[%136, %c0_60], %134 {strides = array<i32>} : memref<512x5xf32, #tpu.memory_space<vmem>>, vector<1x5xf32>,
      %138 = arith.index_cast %132 : i32 to index
      %c0_61 = arith.constant 0 : index
      %139 = vector.load %arg3[%138, %c0_61] : memref<256x5xf32, #tpu.memory_space<vmem>>, vector<1x5xf32>
      %c6_i32_62 = arith.constant 6 : i32
      %140 = arith.addi %16, %c6_i32_62 : i32
      %141 = arith.index_cast %140 : i32 to index
      %c0_63 = arith.constant 0 : index
      %142 = vector.load %arg8[%141, %c0_63] : memref<512x5xf32, #tpu.memory_space<vmem>>, vector<1x5xf32>
      tpu.vector_store %arg8[%141, %c0_63], %139 {strides = array<i32>} : memref<512x5xf32, #tpu.memory_space<vmem>>, vector<1x5xf32>,
      %143 = arith.addi %0, %16 : i32
      %c7_i32 = arith.constant 7 : i32
      %144 = arith.addi %143, %c7_i32 : i32
      %145 = arith.index_cast %144 : i32 to index
      %146 = memref.load %arg1[%145] : memref<512xi32, #tpu.memory_space<smem>>
      %147 = arith.addi %0, %16 : i32
      %c7_i32_64 = arith.constant 7 : i32
      %148 = arith.addi %147, %c7_i32_64 : i32
      %149 = arith.index_cast %148 : i32 to index
      %150 = memref.load %arg2[%149] : memref<512xi32, #tpu.memory_space<smem>>
      %151 = arith.index_cast %146 : i32 to index
      %c0_65 = arith.constant 0 : index
      %152 = vector.load %arg3[%151, %c0_65] : memref<256x5xf32, #tpu.memory_space<vmem>>, vector<1x5xf32>
      %c7_i32_66 = arith.constant 7 : i32
      %153 = arith.addi %16, %c7_i32_66 : i32
      %154 = arith.index_cast %153 : i32 to index
      %c0_67 = arith.constant 0 : index
      %155 = vector.load %arg9[%154, %c0_67] : memref<512x5xf32, #tpu.memory_space<vmem>>, vector<1x5xf32>
      tpu.vector_store %arg9[%154, %c0_67], %152 {strides = array<i32>} : memref<512x5xf32, #tpu.memory_space<vmem>>, vector<1x5xf32>,
      %156 = arith.index_cast %150 : i32 to index
      %c0_68 = arith.constant 0 : index
      %157 = vector.load %arg3[%156, %c0_68] : memref<256x5xf32, #tpu.memory_space<vmem>>, vector<1x5xf32>
      %c7_i32_69 = arith.constant 7 : i32
      %158 = arith.addi %16, %c7_i32_69 : i32
      %159 = arith.index_cast %158 : i32 to index
      %c0_70 = arith.constant 0 : index
      %160 = vector.load %arg8[%159, %c0_70] : memref<512x5xf32, #tpu.memory_space<vmem>>, vector<1x5xf32>
      tpu.vector_store %arg8[%159, %c0_70], %157 {strides = array<i32>} : memref<512x5xf32, #tpu.memory_space<vmem>>, vector<1x5xf32>,
    }
    %c64_i32_0 = arith.constant 64 : i32
    %c0 = arith.constant 0 : index
    %c0_1 = arith.constant 0 : index
    %2 = vector.load %arg4[%c0, %c0_1] : memref<2x5xf32, #tpu.memory_space<vmem>>, vector<2x5xf32>
    %c0_2 = arith.constant 0 : index
    %c0_3 = arith.constant 0 : index
    %3 = vector.load %arg8[%c0_2, %c0_3] : memref<512x5xf32, #tpu.memory_space<vmem>>, vector<512x5xf32>
    %4 = tpu.transpose %3, [1, 0] : vector<512x5xf32> -> vector<5x512xf32>
    %cst = arith.constant dense<0.000000e+00> : vector<2x512xf32>
    %5 = tpu.matmul %2, %4, %cst {dimension_numbers = #tpu.dot_dimension_numbers<[1], [0], [0], [1], [0, 0, 1, 1], [], []>} : vector<2x5xf32>, vector<5x512xf32>, vector<2x512xf32> -> vector<2x512xf32>
    %c0_4 = arith.constant 0 : index
    %c0_5 = arith.constant 0 : index
    %6 = vector.load %arg5[%c0_4, %c0_5] : memref<2x5xf32, #tpu.memory_space<vmem>>, vector<2x5xf32>
    %c0_6 = arith.constant 0 : index
    %c0_7 = arith.constant 0 : index
    %7 = vector.load %arg9[%c0_6, %c0_7] : memref<512x5xf32, #tpu.memory_space<vmem>>, vector<512x5xf32>
    %8 = tpu.transpose %7, [1, 0] : vector<512x5xf32> -> vector<5x512xf32>
    %cst_8 = arith.constant dense<0.000000e+00> : vector<2x512xf32>
    %9 = tpu.matmul %6, %8, %cst_8 {dimension_numbers = #tpu.dot_dimension_numbers<[1], [0], [0], [1], [0, 0, 1, 1], [], []>} : vector<2x5xf32>, vector<5x512xf32>, vector<2x512xf32> -> vector<2x512xf32>
    %10 = arith.addf %5, %9 : vector<2x512xf32>
    %c0_9 = arith.constant 0 : index
    %c0_10 = arith.constant 0 : index
    %11 = vector.load %arg6[%c0_9, %c0_10] : memref<2x1xf32, #tpu.memory_space<vmem>>, vector<2x1xf32>
    %12 = vector.broadcast %11 : vector<2x1xf32> to vector<2x512xf32>
    %13 = arith.addf %10, %12 : vector<2x512xf32>
    %c0_11 = arith.constant 0 : index
    %c0_12 = arith.constant 0 : index
    %14 = vector.load %arg7[%c0_11, %c0_12] : memref<2x512xf32, #tpu.memory_space<vmem>>, vector<2x512xf32>
    tpu.vector_store %arg7[%c0_11, %c0_12], %13 {strides = array<i32>} : memref<2x512xf32, #tpu.memory_space<vmem>>, vector<2x512xf32>,
    return
  }
  func.func @transform_0(%arg0: i32, %arg1: memref<512xi32, #tpu.memory_space<smem>>, %arg2: memref<512xi32, #tpu.memory_space<smem>>) -> (i32, i32) {
    %c0_i32 = arith.constant 0 : i32
    %c0_i32_0 = arith.constant 0 : i32
    %c0_i32_1 = arith.constant 0 : i32
    return %c0_i32, %c0_i32_0 : i32, i32
  }
  func.func @transform_1(%arg0: i32, %arg1: memref<512xi32, #tpu.memory_space<smem>>, %arg2: memref<512xi32, #tpu.memory_space<smem>>) -> (i32, i32) {
    %c0_i32 = arith.constant 0 : i32
    %c0_i32_0 = arith.constant 0 : i32
    %c0_i32_1 = arith.constant 0 : i32
    return %c0_i32, %c0_i32_0 : i32, i32
  }
  func.func @transform_2(%arg0: i32, %arg1: memref<512xi32, #tpu.memory_space<smem>>, %arg2: memref<512xi32, #tpu.memory_space<smem>>) -> (i32, i32) {
    %c0_i32 = arith.constant 0 : i32
    %c0_i32_0 = arith.constant 0 : i32
    %c0_i32_1 = arith.constant 0 : i32
    return %c0_i32, %c0_i32_0 : i32, i32
  }
  func.func @transform_3(%arg0: i32, %arg1: memref<512xi32, #tpu.memory_space<smem>>, %arg2: memref<512xi32, #tpu.memory_space<smem>>) -> (i32, i32) {
    %c0_i32 = arith.constant 0 : i32
    %c0_i32_0 = arith.constant 0 : i32
    %c0_i32_1 = arith.constant 0 : i32
    return %c0_i32, %c0_i32_0 : i32, i32
  }
  func.func @transform_4(%arg0: i32, %arg1: memref<512xi32, #tpu.memory_space<smem>>, %arg2: memref<512xi32, #tpu.memory_space<smem>>) -> (i32, i32) {
    %c0_i32 = arith.constant 0 : i32
    %c0_i32_0 = arith.constant 0 : i32
    return %c0_i32, %arg0 : i32, i32
  }
}

</mosaic_0001>

<llo_original>
// kernel: net_conv_forward.2
$region0: #{net_conv_forward.2}
  #allocation0 [shape = 'u32[]', space=smem, size = 0x4, offset = 0x4, fixed_abs, tag = 'smem constant byte address 0x4 - core index']
  #allocation1 [shape = 'u32[144,128]{1,0:T(1,128)}', space=vmem, size = 0x12000, scoped, tag = 'internal scratch']
  #allocation2 [shape = 'f32[256,1]{1,0:T(8,128)}', space=vmem, size = 0x20000, scoped, tag = 'scratch operand']
  %s0 = inlined_call_operand.vmem [shape: bf16[256,256], index: 0, kind: input, shape index: {}]
  %s1 = inlined_call_operand.vmem [shape: bf16[256,1], index: 1, kind: input, shape index: {}]
  %s2 = inlined_call_operand.vmem [shape: f32[1,5], index: 2, kind: input, shape index: {}]
  %s3 = inlined_call_operand.vmem [shape: f32[1,5], index: 3, kind: input, shape index: {}]
  %s4 = inlined_call_operand.vmem [shape: f32[256,5], index: 4, kind: output, shape index: {}]
  %s5 = sld [smem:[#allocation0]]
  $region34: #{net_conv_forward.2} parent=0
    _
  %s7 = ssub.s32 1, %s5
  %s8 = scalar_select 0, %s7, %s5
  // Predicated region
  $region2: #{net_conv_forward.2} parent=0 // pred_check
    _
  $region3: #{net_conv_forward.2} parent=0 // pred_check_branch
    %10 = sbr.rel (0) target = $region5
  $region4: #{net_conv_forward.2} parent=0 // pred_region
    _
  $region5: #{net_conv_forward.2} parent=0 // pred_fallthru
    _
  // Predicated region
  $region6: #{net_conv_forward.2} parent=0 // pred_check
    _
  $region7: #{net_conv_forward.2} parent=0 // pred_check_branch
    %12 = sbr.rel (0) target = $region9
  $region8: #{net_conv_forward.2} parent=0 // pred_region
    _
  $region9: #{net_conv_forward.2} parent=0 // pred_fallthru
    _
  // Predicated region
  $region10: #{net_conv_forward.2} parent=0 // pred_check
    _
  $region11: #{net_conv_forward.2} parent=0 // pred_check_branch
    %14 = sbr.rel (0) target = $region13
  $region12: #{net_conv_forward.2} parent=0 // pred_region
    _
  $region13: #{net_conv_forward.2} parent=0 // pred_fallthru
    _
  // Predicated region
  $region14: #{net_conv_forward.2} parent=0 // pred_check
    _
  $region15: #{net_conv_forward.2} parent=0 // pred_check_branch
    %16 = sbr.rel (0) target = $region17
  $region16: #{net_conv_forward.2} parent=0 // pred_region
    _
  $region17: #{net_conv_forward.2} parent=0 // pred_fallthru
    _
  %p18 = scmp.eq.s32.totalorder 0, 0
  // Predicated region
  $region18: #{net_conv_forward.2} parent=0 // pred_check
    %p19 = pneg %p18
  $region19: #{net_conv_forward.2} parent=0 // pred_check_branch
    %21 = sbr.rel (%p19) target = $region21
  $region20: #{net_conv_forward.2} parent=0 // pred_region
    %vm22 = vcmask 7168
    %23 = vst.msk [vmem:[#allocation2] sm:$0xff] %vm22, 0.0
    %24 = vst.msk [vmem:[#allocation2 + $0x8] sm:$0xff] %vm22, 0.0
    %25 = vst.msk [vmem:[#allocation2 + $0x10] sm:$0xff] %vm22, 0.0
    %26 = vst.msk [vmem:[#allocation2 + $0x18] sm:$0xff] %vm22, 0.0
    %27 = vst.msk [vmem:[#allocation2 + $0x20] sm:$0xff] %vm22, 0.0
    %28 = vst.msk [vmem:[#allocation2 + $0x28] sm:$0xff] %vm22, 0.0
    %29 = vst.msk [vmem:[#allocation2 + $0x30] sm:$0xff] %vm22, 0.0
    %30 = vst.msk [vmem:[#allocation2 + $0x38] sm:$0xff] %vm22, 0.0
    %31 = vst.msk [vmem:[#allocation2 + $0x40] sm:$0xff] %vm22, 0.0
    %32 = vst.msk [vmem:[#allocation2 + $0x48] sm:$0xff] %vm22, 0.0
    %33 = vst.msk [vmem:[#allocation2 + $0x50] sm:$0xff] %vm22, 0.0
    %34 = vst.msk [vmem:[#allocation2 + $0x58] sm:$0xff] %vm22, 0.0
    %35 = vst.msk [vmem:[#allocation2 + $0x60] sm:$0xff] %vm22, 0.0
    %36 = vst.msk [vmem:[#allocation2 + $0x68] sm:$0xff] %vm22, 0.0
    %37 = vst.msk [vmem:[#allocation2 + $0x70] sm:$0xff] %vm22, 0.0
    %38 = vst.msk [vmem:[#allocation2 + $0x78] sm:$0xff] %vm22, 0.0
    %39 = vst.msk [vmem:[#allocation2 + $0x80] sm:$0xff] %vm22, 0.0
    %40 = vst.msk [vmem:[#allocation2 + $0x88] sm:$0xff] %vm22, 0.0
    %41 = vst.msk [vmem:[#allocation2 + $0x90] sm:$0xff] %vm22, 0.0
    %42 = vst.msk [vmem:[#allocation2 + $0x98] sm:$0xff] %vm22, 0.0
    %43 = vst.msk [vmem:[#allocation2 + $0xa0] sm:$0xff] %vm22, 0.0
    %44 = vst.msk [vmem:[#allocation2 + $0xa8] sm:$0xff] %vm22, 0.0
    %45 = vst.msk [vmem:[#allocation2 + $0xb0] sm:$0xff] %vm22, 0.0
    %46 = vst.msk [vmem:[#allocation2 + $0xb8] sm:$0xff] %vm22, 0.0
    %47 = vst.msk [vmem:[#allocation2 + $0xc0] sm:$0xff] %vm22, 0.0
    %48 = vst.msk [vmem:[#allocation2 + $0xc8] sm:$0xff] %vm22, 0.0
    %49 = vst.msk [vmem:[#allocation2 + $0xd0] sm:$0xff] %vm22, 0.0
    %50 = vst.msk [vmem:[#allocation2 + $0xd8] sm:$0xff] %vm22, 0.0
    %51 = vst.msk [vmem:[#allocation2 + $0xe0] sm:$0xff] %vm22, 0.0
    %52 = vst.msk [vmem:[#allocation2 + $0xe8] sm:$0xff] %vm22, 0.0
    %53 = vst.msk [vmem:[#allocation2 + $0xf0] sm:$0xff] %vm22, 0.0
    %54 = vst.msk [vmem:[#allocation2 + $0xf8] sm:$0xff] %vm22, 0.0
  $region21: #{net_conv_forward.2} parent=0 // pred_fallthru
    _
  %v55 = vld [vmem:[#allocation2] sm:$0xff]
  %v56 = vld [vmem:[#allocation2 + $0x8] sm:$0xff]
  %v57 = vld [vmem:[#allocation2 + $0x10] sm:$0xff]
  %v58 = vld [vmem:[#allocation2 + $0x18] sm:$0xff]
  %v59 = vld [vmem:[#allocation2 + $0x20] sm:$0xff]
  %v60 = vld [vmem:[#allocation2 + $0x28] sm:$0xff]
  %v61 = vld [vmem:[#allocation2 + $0x30] sm:$0xff]
  %v62 = vld [vmem:[#allocation2 + $0x38] sm:$0xff]
  %v63 = vld [vmem:[#allocation2 + $0x40] sm:$0xff]
  %v64 = vld [vmem:[#allocation2 + $0x48] sm:$0xff]
  %v65 = vld [vmem:[#allocation2 + $0x50] sm:$0xff]
  %v66 = vld [vmem:[#allocation2 + $0x58] sm:$0xff]
  %v67 = vld [vmem:[#allocation2 + $0x60] sm:$0xff]
  %v68 = vld [vmem:[#allocation2 + $0x68] sm:$0xff]
  %v69 = vld [vmem:[#allocation2 + $0x70] sm:$0xff]
  %v70 = vld [vmem:[#allocation2 + $0x78] sm:$0xff]
  %v71 = vld [vmem:[#allocation2 + $0x80] sm:$0xff]
  %v72 = vld [vmem:[#allocation2 + $0x88] sm:$0xff]
  %v73 = vld [vmem:[#allocation2 + $0x90] sm:$0xff]
  %v74 = vld [vmem:[#allocation2 + $0x98] sm:$0xff]
  %v75 = vld [vmem:[#allocation2 + $0xa0] sm:$0xff]
  %v76 = vld [vmem:[#allocation2 + $0xa8] sm:$0xff]
  %v77 = vld [vmem:[#allocation2 + $0xb0] sm:$0xff]
  %v78 = vld [vmem:[#allocation2 + $0xb8] sm:$0xff]
  %v79 = vld [vmem:[#allocation2 + $0xc0] sm:$0xff]
  %v80 = vld [vmem:[#allocation2 + $0xc8] sm:$0xff]
  %v81 = vld [vmem:[#allocation2 + $0xd0] sm:$0xff]
  %v82 = vld [vmem:[#allocation2 + $0xd8] sm:$0xff]
  %v83 = vld [vmem:[#allocation2 + $0xe0] sm:$0xff]
  %v84 = vld [vmem:[#allocation2 + $0xe8] sm:$0xff]
  %v85 = vld [vmem:[#allocation2 + $0xf0] sm:$0xff]
  %v86 = vld [vmem:[#allocation2 + $0xf8] sm:$0xff]
  %v87 = vld [vmem:[%s0] sm:$0xff]
  %v88 = vld [vmem:[%s0 + $0x8] sm:$0xff]
  %v89 = vld [vmem:[%s0 + $0x10] sm:$0xff]
  %v90 = vld [vmem:[%s0 + $0x18] sm:$0xff]
  %v91 = vld [vmem:[%s0 + $0x20] sm:$0xff]
  %v92 = vld [vmem:[%s0 + $0x28] sm:$0xff]
  %v93 = vld [vmem:[%s0 + $0x30] sm:$0xff]
  %v94 = vld [vmem:[%s0 + $0x38] sm:$0xff]
  %v95 = vld [vmem:[%s0 + $0x40] sm:$0xff]
  %v96 = vld [vmem:[%s0 + $0x48] sm:$0xff]
  %v97 = vld [vmem:[%s0 + $0x50] sm:$0xff]
  %v98 = vld [vmem:[%s0 + $0x58] sm:$0xff]
  %v99 = vld [vmem:[%s0 + $0x60] sm:$0xff]
  %v100 = vld [vmem:[%s0 + $0x68] sm:$0xff]
  %v101 = vld [vmem:[%s0 + $0x70] sm:$0xff]
  %v102 = vld [vmem:[%s0 + $0x78] sm:$0xff]
  %v103 = vld [vmem:[%s0 + $0x80] sm:$0xff]
  %v104 = vld [vmem:[%s0 + $0x88] sm:$0xff]
  %v105 = vld [vmem:[%s0 + $0x90] sm:$0xff]
  %v106 = vld [vmem:[%s0 + $0x98] sm:$0xff]
  %v107 = vld [vmem:[%s0 + $0xa0] sm:$0xff]
  %v108 = vld [vmem:[%s0 + $0xa8] sm:$0xff]
  %v109 = vld [vmem:[%s0 + $0xb0] sm:$0xff]
  %v110 = vld [vmem:[%s0 + $0xb8] sm:$0xff]
  %v111 = vld [vmem:[%s0 + $0xc0] sm:$0xff]
  %v112 = vld [vmem:[%s0 + $0xc8] sm:$0xff]
  %v113 = vld [vmem:[%s0 + $0xd0] sm:$0xff]
  %v114 = vld [vmem:[%s0 + $0xd8] sm:$0xff]
  %v115 = vld [vmem:[%s0 + $0xe0] sm:$0xff]
  %v116 = vld [vmem:[%s0 + $0xe8] sm:$0xff]
  %v117 = vld [vmem:[%s0 + $0xf0] sm:$0xff]
  %v118 = vld [vmem:[%s0 + $0xf8] sm:$0xff]
  %v119 = vld [vmem:[%s1] sm:$0xf]
  %v120 = vld [vmem:[%s1 + $0x4] sm:$0xf]
  %v121 = vld [vmem:[%s1 + $0x8] sm:$0xf]
  %v122 = vld [vmem:[%s1 + $0xc] sm:$0xf]
  %v123 = vld [vmem:[%s1 + $0x10] sm:$0xf]
  %v124 = vld [vmem:[%s1 + $0x14] sm:$0xf]
  %v125 = vld [vmem:[%s1 + $0x18] sm:$0xf]
  %v126 = vld [vmem:[%s1 + $0x1c] sm:$0xf]
  %v127 = vld [vmem:[%s1 + $0x20] sm:$0xf]
  %v128 = vld [vmem:[%s1 + $0x24] sm:$0xf]
  %v129 = vld [vmem:[%s1 + $0x28] sm:$0xf]
  %v130 = vld [vmem:[%s1 + $0x2c] sm:$0xf]
  %v131 = vld [vmem:[%s1 + $0x30] sm:$0xf]
  %v132 = vld [vmem:[%s1 + $0x34] sm:$0xf]
  %v133 = vld [vmem:[%s1 + $0x38] sm:$0xf]
  %v134 = vld [vmem:[%s1 + $0x3c] sm:$0xf]
  %v135 = vld [vmem:[%s1 + $0x40] sm:$0xf]
  %v136 = vld [vmem:[%s1 + $0x44] sm:$0xf]
  %v137 = vld [vmem:[%s1 + $0x48] sm:$0xf]
  %v138 = vld [vmem:[%s1 + $0x4c] sm:$0xf]
  %v139 = vld [vmem:[%s1 + $0x50] sm:$0xf]
  %v140 = vld [vmem:[%s1 + $0x54] sm:$0xf]
  %v141 = vld [vmem:[%s1 + $0x58] sm:$0xf]
  %v142 = vld [vmem:[%s1 + $0x5c] sm:$0xf]
  %v143 = vld [vmem:[%s1 + $0x60] sm:$0xf]
  %v144 = vld [vmem:[%s1 + $0x64] sm:$0xf]
  %v145 = vld [vmem:[%s1 + $0x68] sm:$0xf]
  %v146 = vld [vmem:[%s1 + $0x6c] sm:$0xf]
  %v147 = vld [vmem:[%s1 + $0x70] sm:$0xf]
  %v148 = vld [vmem:[%s1 + $0x74] sm:$0xf]
  %v149 = vld [vmem:[%s1 + $0x78] sm:$0xf]
  %v150 = vld [vmem:[%s1 + $0x7c] sm:$0xf]
  %v183 = vunpack.c.l.b16 %v87
  %v184 = vunpack.c.h.b16 %v87
  %v185 = vunpack.c.l.b16 %v88
  %v186 = vunpack.c.h.b16 %v88
  %v187 = vunpack.c.l.b16 %v89
  %v188 = vunpack.c.h.b16 %v89
  %v189 = vunpack.c.l.b16 %v90
  %v190 = vunpack.c.h.b16 %v90
  %v191 = vunpack.c.l.b16 %v91
  %v192 = vunpack.c.h.b16 %v91
  %v193 = vunpack.c.l.b16 %v92
  %v194 = vunpack.c.h.b16 %v92
  %v195 = vunpack.c.l.b16 %v93
  %v196 = vunpack.c.h.b16 %v93
  %v197 = vunpack.c.l.b16 %v94
  %v198 = vunpack.c.h.b16 %v94
  %v199 = vunpack.c.l.b16 %v95
  %v200 = vunpack.c.h.b16 %v95
  %v201 = vunpack.c.l.b16 %v96
  %v202 = vunpack.c.h.b16 %v96
  %v203 = vunpack.c.l.b16 %v97
  %v204 = vunpack.c.h.b16 %v97
  %v205 = vunpack.c.l.b16 %v98
  %v206 = vunpack.c.h.b16 %v98
  %v207 = vunpack.c.l.b16 %v99
  %v208 = vunpack.c.h.b16 %v99
  %v209 = vunpack.c.l.b16 %v100
  %v210 = vunpack.c.h.b16 %v100
  %v211 = vunpack.c.l.b16 %v101
  %v212 = vunpack.c.h.b16 %v101
  %v213 = vunpack.c.l.b16 %v102
  %v214 = vunpack.c.h.b16 %v102
  %v215 = vunpack.c.l.b16 %v103
  %v216 = vunpack.c.h.b16 %v103
  %v217 = vunpack.c.l.b16 %v104
  %v218 = vunpack.c.h.b16 %v104
  %v219 = vunpack.c.l.b16 %v105
  %v220 = vunpack.c.h.b16 %v105
  %v221 = vunpack.c.l.b16 %v106
  %v222 = vunpack.c.h.b16 %v106
  %v223 = vunpack.c.l.b16 %v107
  %v224 = vunpack.c.h.b16 %v107
  %v225 = vunpack.c.l.b16 %v108
  %v226 = vunpack.c.h.b16 %v108
  %v227 = vunpack.c.l.b16 %v109
  %v228 = vunpack.c.h.b16 %v109
  %v229 = vunpack.c.l.b16 %v110
  %v230 = vunpack.c.h.b16 %v110
  %v231 = vunpack.c.l.b16 %v111
  %v232 = vunpack.c.h.b16 %v111
  %v233 = vunpack.c.l.b16 %v112
  %v234 = vunpack.c.h.b16 %v112
  %v235 = vunpack.c.l.b16 %v113
  %v236 = vunpack.c.h.b16 %v113
  %v237 = vunpack.c.l.b16 %v114
  %v238 = vunpack.c.h.b16 %v114
  %v239 = vunpack.c.l.b16 %v115
  %v240 = vunpack.c.h.b16 %v115
  %v241 = vunpack.c.l.b16 %v116
  %v242 = vunpack.c.h.b16 %v116
  %v243 = vunpack.c.l.b16 %v117
  %v244 = vunpack.c.h.b16 %v117
  %v245 = vunpack.c.l.b16 %v118
  %v246 = vunpack.c.h.b16 %v118
  %v247 = vpack.c.b16 %v185, %v183
  %v248 = vpack.c.b16 %v186, %v184
  %v249 = vpack.c.b16 %v189, %v187
  %v250 = vpack.c.b16 %v190, %v188
  %v251 = vpack.c.b16 %v193, %v191
  %v252 = vpack.c.b16 %v194, %v192
  %v253 = vpack.c.b16 %v197, %v195
  %v254 = vpack.c.b16 %v198, %v196
  %v255 = vpack.c.b16 %v201, %v199
  %v256 = vpack.c.b16 %v202, %v200
  %v257 = vpack.c.b16 %v205, %v203
  %v258 = vpack.c.b16 %v206, %v204
  %v259 = vpack.c.b16 %v209, %v207
  %v260 = vpack.c.b16 %v210, %v208
  %v261 = vpack.c.b16 %v213, %v211
  %v262 = vpack.c.b16 %v214, %v212
  %v263 = vpack.c.b16 %v217, %v215
  %v264 = vpack.c.b16 %v218, %v216
  %v265 = vpack.c.b16 %v221, %v219
  %v266 = vpack.c.b16 %v222, %v220
  %v267 = vpack.c.b16 %v225, %v223
  %v268 = vpack.c.b16 %v226, %v224
  %v269 = vpack.c.b16 %v229, %v227
  %v270 = vpack.c.b16 %v230, %v228
  %v271 = vpack.c.b16 %v233, %v231
  %v272 = vpack.c.b16 %v234, %v232
  %v273 = vpack.c.b16 %v237, %v235
  %v274 = vpack.c.b16 %v238, %v236
  %v275 = vpack.c.b16 %v241, %v239
  %v276 = vpack.c.b16 %v242, %v240
  %v277 = vpack.c.b16 %v245, %v243
  %v278 = vpack.c.b16 %v246, %v244
  %v343 = vunpack.c.l.b16 %v119
  %v344 = vunpack.c.l.b16 %v120
  %v345 = vunpack.c.l.b16 %v121
  %v346 = vunpack.c.l.b16 %v122
  %v347 = vunpack.c.l.b16 %v123
  %v348 = vunpack.c.l.b16 %v124
  %v349 = vunpack.c.l.b16 %v125
  %v350 = vunpack.c.l.b16 %v126
  %v351 = vunpack.c.l.b16 %v127
  %v352 = vunpack.c.l.b16 %v128
  %v353 = vunpack.c.l.b16 %v129
  %v354 = vunpack.c.l.b16 %v130
  %v355 = vunpack.c.l.b16 %v131
  %v356 = vunpack.c.l.b16 %v132
  %v357 = vunpack.c.l.b16 %v133
  %v358 = vunpack.c.l.b16 %v134
  %v359 = vunpack.c.l.b16 %v135
  %v360 = vunpack.c.l.b16 %v136
  %v361 = vunpack.c.l.b16 %v137
  %v362 = vunpack.c.l.b16 %v138
  %v363 = vunpack.c.l.b16 %v139
  %v364 = vunpack.c.l.b16 %v140
  %v365 = vunpack.c.l.b16 %v141
  %v366 = vunpack.c.l.b16 %v142
  %v367 = vunpack.c.l.b16 %v143
  %v368 = vunpack.c.l.b16 %v144
  %v369 = vunpack.c.l.b16 %v145
  %v370 = vunpack.c.l.b16 %v146
  %v371 = vunpack.c.l.b16 %v147
  %v372 = vunpack.c.l.b16 %v148
  %v373 = vunpack.c.l.b16 %v149
  %v374 = vunpack.c.l.b16 %v150
  %v375 = vpack.c.b16 %v344, %v343
  %v376 = vpack.c.b16 %v346, %v345
  %v377 = vpack.c.b16 %v348, %v347
  %v378 = vpack.c.b16 %v350, %v349
  %v379 = vpack.c.b16 %v352, %v351
  %v380 = vpack.c.b16 %v354, %v353
  %v381 = vpack.c.b16 %v356, %v355
  %v382 = vpack.c.b16 %v358, %v357
  %v383 = vpack.c.b16 %v360, %v359
  %v384 = vpack.c.b16 %v362, %v361
  %v385 = vpack.c.b16 %v364, %v363
  %v386 = vpack.c.b16 %v366, %v365
  %v387 = vpack.c.b16 %v368, %v367
  %v388 = vpack.c.b16 %v370, %v369
  %v389 = vpack.c.b16 %v372, %v371
  %v390 = vpack.c.b16 %v374, %v373
  %407 = vmatprep.subr.bf16.mxu0 0
  %408 = vmatpush1.bf16.msra.mxu0 %v375
  %409 = vmatprep.subr.bf16.mxu0 0
  %410 = vmatpush1.bf16.msra.mxu0 %v376
  %411 = vmatprep.subr.bf16.mxu0 0
  %412 = vmatpush1.bf16.msra.mxu0 %v377
  %413 = vmatprep.subr.bf16.mxu0 0
  %414 = vmatpush1.bf16.msra.mxu0 %v378
  %415 = vmatprep.subr.bf16.mxu0 0
  %416 = vmatpush1.bf16.msra.mxu0 %v379
  %417 = vmatprep.subr.bf16.mxu0 0
  %418 = vmatpush1.bf16.msra.mxu0 %v380
  %419 = vmatprep.subr.bf16.mxu0 0
  %420 = vmatpush1.bf16.msra.mxu0 %v381
  %421 = vmatprep.subr.bf16.mxu0 0
  %422 = vmatpush1.bf16.msra.mxu0 %v382
  %423 = vmatprep.subr.bf16.mxu0 0
  %424 = vmatpush1.bf16.msra.mxu0 %v383
  %425 = vmatprep.subr.bf16.mxu0 0
  %426 = vmatpush1.bf16.msra.mxu0 %v384
  %427 = vmatprep.subr.bf16.mxu0 0
  %428 = vmatpush1.bf16.msra.mxu0 %v385
  %429 = vmatprep.subr.bf16.mxu0 0
  %430 = vmatpush1.bf16.msra.mxu0 %v386
  %431 = vmatprep.subr.bf16.mxu0 0
  %432 = vmatpush1.bf16.msra.mxu0 %v387
  %433 = vmatprep.subr.bf16.mxu0 0
  %434 = vmatpush1.bf16.msra.mxu0 %v388
  %435 = vmatprep.subr.bf16.mxu0 0
  %436 = vmatpush1.bf16.msra.mxu0 %v389
  %437 = vmatprep.subr.bf16.mxu0 0
  %438 = vmatpush1.bf16.msra.mxu0 %v390
  %439 = vmatprep.mubr.bf16.mxu0 %v248
  %440 = vmatmul.mubr.bf16.gmra.mrb[0].mxu0 %v247
  %v441 = vpop.f32.mrb[0].mxu0
  %v442 = vadd.f32 0.0, %v441
  %v443 = vpop.f32.mrb[0].mxu0
  %v444 = vpop.f32.mrb[0].mxu0
  %v445 = vadd.f32 0.0, %v444
  %v446 = vpop.f32.mrb[0].mxu0
  %447 = vmatprep.mubr.bf16.mxu0 %v250
  %448 = vmatmul.mubr.bf16.gmra.mrb[0].mxu0 %v249
  %v449 = vpop.f32.mrb[0].mxu0
  %v450 = vadd.f32 0.0, %v449
  %v451 = vpop.f32.mrb[0].mxu0
  %v452 = vpop.f32.mrb[0].mxu0
  %v453 = vadd.f32 0.0, %v452
  %v454 = vpop.f32.mrb[0].mxu0
  %455 = vmatprep.mubr.bf16.mxu0 %v252
  %456 = vmatmul.mubr.bf16.gmra.mrb[0].mxu0 %v251
  %v457 = vpop.f32.mrb[0].mxu0
  %v458 = vadd.f32 0.0, %v457
  %v459 = vpop.f32.mrb[0].mxu0
  %v460 = vpop.f32.mrb[0].mxu0
  %v461 = vadd.f32 0.0, %v460
  %v462 = vpop.f32.mrb[0].mxu0
  %463 = vmatprep.mubr.bf16.mxu0 %v254
  %464 = vmatmul.mubr.bf16.gmra.mrb[0].mxu0 %v253
  %v465 = vpop.f32.mrb[0].mxu0
  %v466 = vadd.f32 0.0, %v465
  %v467 = vpop.f32.mrb[0].mxu0
  %v468 = vpop.f32.mrb[0].mxu0
  %v469 = vadd.f32 0.0, %v468
  %v470 = vpop.f32.mrb[0].mxu0
  %471 = vmatprep.mubr.bf16.mxu0 %v256
  %472 = vmatmul.mubr.bf16.gmra.mrb[0].mxu0 %v255
  %v473 = vpop.f32.mrb[0].mxu0
  %v474 = vadd.f32 0.0, %v473
  %v475 = vpop.f32.mrb[0].mxu0
  %v476 = vpop.f32.mrb[0].mxu0
  %v477 = vadd.f32 0.0, %v476
  %v478 = vpop.f32.mrb[0].mxu0
  %479 = vmatprep.mubr.bf16.mxu0 %v258
  %480 = vmatmul.mubr.bf16.gmra.mrb[0].mxu0 %v257
  %v481 = vpop.f32.mrb[0].mxu0
  %v482 = vadd.f32 0.0, %v481
  %v483 = vpop.f32.mrb[0].mxu0
  %v484 = vpop.f32.mrb[0].mxu0
  %v485 = vadd.f32 0.0, %v484
  %v486 = vpop.f32.mrb[0].mxu0
  %487 = vmatprep.mubr.bf16.mxu0 %v260
  %488 = vmatmul.mubr.bf16.gmra.mrb[0].mxu0 %v259
  %v489 = vpop.f32.mrb[0].mxu0
  %v490 = vadd.f32 0.0, %v489
  %v491 = vpop.f32.mrb[0].mxu0
  %v492 = vpop.f32.mrb[0].mxu0
  %v493 = vadd.f32 0.0, %v492
  %v494 = vpop.f32.mrb[0].mxu0
  %495 = vmatprep.mubr.bf16.mxu0 %v262
  %496 = vmatmul.mubr.bf16.gmra.mrb[0].mxu0 %v261
  %v497 = vpop.f32.mrb[0].mxu0
  %v498 = vadd.f32 0.0, %v497
  %v499 = vpop.f32.mrb[0].mxu0
  %v500 = vpop.f32.mrb[0].mxu0
  %v501 = vadd.f32 0.0, %v500
  %v502 = vpop.f32.mrb[0].mxu0
  %503 = vmatprep.mubr.bf16.mxu0 %v264
  %504 = vmatmul.mubr.bf16.gmra.mrb[0].mxu0 %v263
  %v505 = vpop.f32.mrb[0].mxu0
  %v506 = vadd.f32 0.0, %v505
  %v507 = vpop.f32.mrb[0].mxu0
  %v508 = vpop.f32.mrb[0].mxu0
  %v509 = vadd.f32 0.0, %v508
  %v510 = vpop.f32.mrb[0].mxu0
  %511 = vmatprep.mubr.bf16.mxu0 %v266
  %512 = vmatmul.mubr.bf16.gmra.mrb[0].mxu0 %v265
  %v513 = vpop.f32.mrb[0].mxu0
  %v514 = vadd.f32 0.0, %v513
  %v515 = vpop.f32.mrb[0].mxu0
  %v516 = vpop.f32.mrb[0].mxu0
  %v517 = vadd.f32 0.0, %v516
  %v518 = vpop.f32.mrb[0].mxu0
  %519 = vmatprep.mubr.bf16.mxu0 %v268
  %520 = vmatmul.mubr.bf16.gmra.mrb[0].mxu0 %v267
  %v521 = vpop.f32.mrb[0].mxu0
  %v522 = vadd.f32 0.0, %v521
  %v523 = vpop.f32.mrb[0].mxu0
  %v524 = vpop.f32.mrb[0].mxu0
  %v525 = vadd.f32 0.0, %v524
  %v526 = vpop.f32.mrb[0].mxu0
  %527 = vmatprep.mubr.bf16.mxu0 %v270
  %528 = vmatmul.mubr.bf16.gmra.mrb[0].mxu0 %v269
  %v529 = vpop.f32.mrb[0].mxu0
  %v530 = vadd.f32 0.0, %v529
  %v531 = vpop.f32.mrb[0].mxu0
  %v532 = vpop.f32.mrb[0].mxu0
  %v533 = vadd.f32 0.0, %v532
  %v534 = vpop.f32.mrb[0].mxu0
  %535 = vmatprep.mubr.bf16.mxu0 %v272
  %536 = vmatmul.mubr.bf16.gmra.mrb[0].mxu0 %v271
  %v537 = vpop.f32.mrb[0].mxu0
  %v538 = vadd.f32 0.0, %v537
  %v539 = vpop.f32.mrb[0].mxu0
  %v540 = vpop.f32.mrb[0].mxu0
  %v541 = vadd.f32 0.0, %v540
  %v542 = vpop.f32.mrb[0].mxu0
  %543 = vmatprep.mubr.bf16.mxu0 %v274
  %544 = vmatmul.mubr.bf16.gmra.mrb[0].mxu0 %v273
  %v545 = vpop.f32.mrb[0].mxu0
  %v546 = vadd.f32 0.0, %v545
  %v547 = vpop.f32.mrb[0].mxu0
  %v548 = vpop.f32.mrb[0].mxu0
  %v549 = vadd.f32 0.0, %v548
  %v550 = vpop.f32.mrb[0].mxu0
  %551 = vmatprep.mubr.bf16.mxu0 %v276
  %552 = vmatmul.mubr.bf16.gmra.mrb[0].mxu0 %v275
  %v553 = vpop.f32.mrb[0].mxu0
  %v554 = vadd.f32 0.0, %v553
  %v555 = vpop.f32.mrb[0].mxu0
  %v556 = vpop.f32.mrb[0].mxu0
  %v557 = vadd.f32 0.0, %v556
  %v558 = vpop.f32.mrb[0].mxu0
  %559 = vmatprep.mubr.bf16.mxu0 %v278
  %560 = vmatmul.mubr.bf16.gmra.mrb[0].mxu0 %v277
  %v561 = vpop.f32.mrb[0].mxu0
  %v562 = vadd.f32 0.0, %v561
  %v563 = vpop.f32.mrb[0].mxu0
  %v564 = vpop.f32.mrb[0].mxu0
  %v565 = vadd.f32 0.0, %v564
  %v566 = vpop.f32.mrb[0].mxu0
  %567 = vdwg.mxu0
  %v568 = vadd.f32 %v55, %v442
  %v569 = vadd.f32 %v56, %v445
  %v570 = vadd.f32 %v57, %v450
  %v571 = vadd.f32 %v58, %v453
  %v572 = vadd.f32 %v59, %v458
  %v573 = vadd.f32 %v60, %v461
  %v574 = vadd.f32 %v61, %v466
  %v575 = vadd.f32 %v62, %v469
  %v576 = vadd.f32 %v63, %v474
  %v577 = vadd.f32 %v64, %v477
  %v578 = vadd.f32 %v65, %v482
  %v579 = vadd.f32 %v66, %v485
  %v580 = vadd.f32 %v67, %v490
  %v581 = vadd.f32 %v68, %v493
  %v582 = vadd.f32 %v69, %v498
  %v583 = vadd.f32 %v70, %v501
  %v584 = vadd.f32 %v71, %v506
  %v585 = vadd.f32 %v72, %v509
  %v586 = vadd.f32 %v73, %v514
  %v587 = vadd.f32 %v74, %v517
  %v588 = vadd.f32 %v75, %v522
  %v589 = vadd.f32 %v76, %v525
  %v590 = vadd.f32 %v77, %v530
  %v591 = vadd.f32 %v78, %v533
  %v592 = vadd.f32 %v79, %v538
  %v593 = vadd.f32 %v80, %v541
  %v594 = vadd.f32 %v81, %v546
  %v595 = vadd.f32 %v82, %v549
  %v596 = vadd.f32 %v83, %v554
  %v597 = vadd.f32 %v84, %v557
  %v598 = vadd.f32 %v85, %v562
  %v599 = vadd.f32 %v86, %v565
  %vm600 = vcmask 7168
  %601 = vst.msk [vmem:[#allocation2] sm:$0xff] %vm600, %v568
  %602 = vst.msk [vmem:[#allocation2 + $0x8] sm:$0xff] %vm600, %v569
  %603 = vst.msk [vmem:[#allocation2 + $0x10] sm:$0xff] %vm600, %v570
  %604 = vst.msk [vmem:[#allocation2 + $0x18] sm:$0xff] %vm600, %v571
  %605 = vst.msk [vmem:[#allocation2 + $0x20] sm:$0xff] %vm600, %v572
  %606 = vst.msk [vmem:[#allocation2 + $0x28] sm:$0xff] %vm600, %v573
  %607 = vst.msk [vmem:[#allocation2 + $0x30] sm:$0xff] %vm600, %v574
  %608 = vst.msk [vmem:[#allocation2 + $0x38] sm:$0xff] %vm600, %v575
  %609 = vst.msk [vmem:[#allocation2 + $0x40] sm:$0xff] %vm600, %v576
  %610 = vst.msk [vmem:[#allocation2 + $0x48] sm:$0xff] %vm600, %v577
  %611 = vst.msk [vmem:[#allocation2 + $0x50] sm:$0xff] %vm600, %v578
  %612 = vst.msk [vmem:[#allocation2 + $0x58] sm:$0xff] %vm600, %v579
  %613 = vst.msk [vmem:[#allocation2 + $0x60] sm:$0xff] %vm600, %v580
  %614 = vst.msk [vmem:[#allocation2 + $0x68] sm:$0xff] %vm600, %v581
  %615 = vst.msk [vmem:[#allocation2 + $0x70] sm:$0xff] %vm600, %v582
  %616 = vst.msk [vmem:[#allocation2 + $0x78] sm:$0xff] %vm600, %v583
  %617 = vst.msk [vmem:[#allocation2 + $0x80] sm:$0xff] %vm600, %v584
  %618 = vst.msk [vmem:[#allocation2 + $0x88] sm:$0xff] %vm600, %v585
  %619 = vst.msk [vmem:[#allocation2 + $0x90] sm:$0xff] %vm600, %v586
  %620 = vst.msk [vmem:[#allocation2 + $0x98] sm:$0xff] %vm600, %v587
  %621 = vst.msk [vmem:[#allocation2 + $0xa0] sm:$0xff] %vm600, %v588
  %622 = vst.msk [vmem:[#allocation2 + $0xa8] sm:$0xff] %vm600, %v589
  %623 = vst.msk [vmem:[#allocation2 + $0xb0] sm:$0xff] %vm600, %v590
  %624 = vst.msk [vmem:[#allocation2 + $0xb8] sm:$0xff] %vm600, %v591
  %625 = vst.msk [vmem:[#allocation2 + $0xc0] sm:$0xff] %vm600, %v592
  %626 = vst.msk [vmem:[#allocation2 + $0xc8] sm:$0xff] %vm600, %v593
  %627 = vst.msk [vmem:[#allocation2 + $0xd0] sm:$0xff] %vm600, %v594
  %628 = vst.msk [vmem:[#allocation2 + $0xd8] sm:$0xff] %vm600, %v595
  %629 = vst.msk [vmem:[#allocation2 + $0xe0] sm:$0xff] %vm600, %v596
  %630 = vst.msk [vmem:[#allocation2 + $0xe8] sm:$0xff] %vm600, %v597
  %631 = vst.msk [vmem:[#allocation2 + $0xf0] sm:$0xff] %vm600, %v598
  %632 = vst.msk [vmem:[#allocation2 + $0xf8] sm:$0xff] %vm600, %v599
  // Predicated region
  $region22: #{net_conv_forward.2} parent=0 // pred_check
    %p633 = pneg %p18
  $region23: #{net_conv_forward.2} parent=0 // pred_check_branch
    %635 = sbr.rel (%p633) target = $region25
  $region24: #{net_conv_forward.2} parent=0 // pred_region
    %v636 = vld [vmem:[#allocation2] sm:$0xff]
    %v637 = vld [vmem:[#allocation2 + $0x8] sm:$0xff]
    %v638 = vld [vmem:[#allocation2 + $0x10] sm:$0xff]
    %v639 = vld [vmem:[#allocation2 + $0x18] sm:$0xff]
    %v640 = vld [vmem:[#allocation2 + $0x20] sm:$0xff]
    %v641 = vld [vmem:[#allocation2 + $0x28] sm:$0xff]
    %v642 = vld [vmem:[#allocation2 + $0x30] sm:$0xff]
    %v643 = vld [vmem:[#allocation2 + $0x38] sm:$0xff]
    %v644 = vld [vmem:[#allocation2 + $0x40] sm:$0xff]
    %v645 = vld [vmem:[#allocation2 + $0x48] sm:$0xff]
    %v646 = vld [vmem:[#allocation2 + $0x50] sm:$0xff]
    %v647 = vld [vmem:[#allocation2 + $0x58] sm:$0xff]
    %v648 = vld [vmem:[#allocation2 + $0x60] sm:$0xff]
    %v649 = vld [vmem:[#allocation2 + $0x68] sm:$0xff]
    %v650 = vld [vmem:[#allocation2 + $0x70] sm:$0xff]
    %v651 = vld [vmem:[#allocation2 + $0x78] sm:$0xff]
    %v652 = vld [vmem:[#allocation2 + $0x80] sm:$0xff]
    %v653 = vld [vmem:[#allocation2 + $0x88] sm:$0xff]
    %v654 = vld [vmem:[#allocation2 + $0x90] sm:$0xff]
    %v655 = vld [vmem:[#allocation2 + $0x98] sm:$0xff]
    %v656 = vld [vmem:[#allocation2 + $0xa0] sm:$0xff]
    %v657 = vld [vmem:[#allocation2 + $0xa8] sm:$0xff]
    %v658 = vld [vmem:[#allocation2 + $0xb0] sm:$0xff]
    %v659 = vld [vmem:[#allocation2 + $0xb8] sm:$0xff]
    %v660 = vld [vmem:[#allocation2 + $0xc0] sm:$0xff]
    %v661 = vld [vmem:[#allocation2 + $0xc8] sm:$0xff]
    %v662 = vld [vmem:[#allocation2 + $0xd0] sm:$0xff]
    %v663 = vld [vmem:[#allocation2 + $0xd8] sm:$0xff]
    %v664 = vld [vmem:[#allocation2 + $0xe0] sm:$0xff]
    %v665 = vld [vmem:[#allocation2 + $0xe8] sm:$0xff]
    %v666 = vld [vmem:[#allocation2 + $0xf0] sm:$0xff]
    %v667 = vld [vmem:[#allocation2 + $0xf8] sm:$0xff]
    %v668 = vld [vmem:[%s2] sm:$0x1]
    %670 = vset.pattern.permute.xlu0 0
    %671 = vperm.xlu0 %670, %v636
    %v672 = vpop.permute.xlu0 %671
    %675 = vset.pattern.permute.xlu0 0
    %676 = vperm.xlu0 %675, %v637
    %v677 = vpop.permute.xlu0 %676
    %680 = vset.pattern.permute.xlu0 0
    %681 = vperm.xlu0 %680, %v638
    %v682 = vpop.permute.xlu0 %681
    %685 = vset.pattern.permute.xlu0 0
    %686 = vperm.xlu0 %685, %v639
    %v687 = vpop.permute.xlu0 %686
    %690 = vset.pattern.permute.xlu0 0
    %691 = vperm.xlu0 %690, %v640
    %v692 = vpop.permute.xlu0 %691
    %695 = vset.pattern.permute.xlu0 0
    %696 = vperm.xlu0 %695, %v641
    %v697 = vpop.permute.xlu0 %696
    %700 = vset.pattern.permute.xlu0 0
    %701 = vperm.xlu0 %700, %v642
    %v702 = vpop.permute.xlu0 %701
    %705 = vset.pattern.permute.xlu0 0
    %706 = vperm.xlu0 %705, %v643
    %v707 = vpop.permute.xlu0 %706
    %710 = vset.pattern.permute.xlu0 0
    %711 = vperm.xlu0 %710, %v644
    %v712 = vpop.permute.xlu0 %711
    %715 = vset.pattern.permute.xlu0 0
    %716 = vperm.xlu0 %715, %v645
    %v717 = vpop.permute.xlu0 %716
    %720 = vset.pattern.permute.xlu0 0
    %721 = vperm.xlu0 %720, %v646
    %v722 = vpop.permute.xlu0 %721
    %725 = vset.pattern.permute.xlu0 0
    %726 = vperm.xlu0 %725, %v647
    %v727 = vpop.permute.xlu0 %726
    %730 = vset.pattern.permute.xlu0 0
    %731 = vperm.xlu0 %730, %v648
    %v732 = vpop.permute.xlu0 %731
    %735 = vset.pattern.permute.xlu0 0
    %736 = vperm.xlu0 %735, %v649
    %v737 = vpop.permute.xlu0 %736
    %740 = vset.pattern.permute.xlu0 0
    %741 = vperm.xlu0 %740, %v650
    %v742 = vpop.permute.xlu0 %741
    %745 = vset.pattern.permute.xlu0 0
    %746 = vperm.xlu0 %745, %v651
    %v747 = vpop.permute.xlu0 %746
    %750 = vset.pattern.permute.xlu0 0
    %751 = vperm.xlu0 %750, %v652
    %v752 = vpop.permute.xlu0 %751
    %755 = vset.pattern.permute.xlu0 0
    %756 = vperm.xlu0 %755, %v653
    %v757 = vpop.permute.xlu0 %756
    %760 = vset.pattern.permute.xlu0 0
    %761 = vperm.xlu0 %760, %v654
    %v762 = vpop.permute.xlu0 %761
    %765 = vset.pattern.permute.xlu0 0
    %766 = vperm.xlu0 %765, %v655
    %v767 = vpop.permute.xlu0 %766
    %770 = vset.pattern.permute.xlu0 0
    %771 = vperm.xlu0 %770, %v656
    %v772 = vpop.permute.xlu0 %771
    %775 = vset.pattern.permute.xlu0 0
    %776 = vperm.xlu0 %775, %v657
    %v777 = vpop.permute.xlu0 %776
    %780 = vset.pattern.permute.xlu0 0
    %781 = vperm.xlu0 %780, %v658
    %v782 = vpop.permute.xlu0 %781
    %785 = vset.pattern.permute.xlu0 0
    %786 = vperm.xlu0 %785, %v659
    %v787 = vpop.permute.xlu0 %786
    %790 = vset.pattern.permute.xlu0 0
    %791 = vperm.xlu0 %790, %v660
    %v792 = vpop.permute.xlu0 %791
    %795 = vset.pattern.permute.xlu0 0
    %796 = vperm.xlu0 %795, %v661
    %v797 = vpop.permute.xlu0 %796
    %800 = vset.pattern.permute.xlu0 0
    %801 = vperm.xlu0 %800, %v662
    %v802 = vpop.permute.xlu0 %801
    %805 = vset.pattern.permute.xlu0 0
    %806 = vperm.xlu0 %805, %v663
    %v807 = vpop.permute.xlu0 %806
    %810 = vset.pattern.permute.xlu0 0
    %811 = vperm.xlu0 %810, %v664
    %v812 = vpop.permute.xlu0 %811
    %815 = vset.pattern.permute.xlu0 0
    %816 = vperm.xlu0 %815, %v665
    %v817 = vpop.permute.xlu0 %816
    %820 = vset.pattern.permute.xlu0 0
    %821 = vperm.xlu0 %820, %v666
    %v822 = vpop.permute.xlu0 %821
    %825 = vset.pattern.permute.xlu0 0
    %826 = vperm.xlu0 %825, %v667
    %v827 = vpop.permute.xlu0 %826
    %v830 = vlaneseq
    %v831 = vshrl.u32 %v830, 7
    %v832 = vsub.s32 0, %v831
    %v833 = vrot.slane %v668, %v832
    %v835 = vmul.f32 %v672, %v833
    %v836 = vmul.f32 %v677, %v833
    %v837 = vmul.f32 %v682, %v833
    %v838 = vmul.f32 %v687, %v833
    %v839 = vmul.f32 %v692, %v833
    %v840 = vmul.f32 %v697, %v833
    %v841 = vmul.f32 %v702, %v833
    %v842 = vmul.f32 %v707, %v833
    %v843 = vmul.f32 %v712, %v833
    %v844 = vmul.f32 %v717, %v833
    %v845 = vmul.f32 %v722, %v833
    %v846 = vmul.f32 %v727, %v833
    %v847 = vmul.f32 %v732, %v833
    %v848 = vmul.f32 %v737, %v833
    %v849 = vmul.f32 %v742, %v833
    %v850 = vmul.f32 %v747, %v833
    %v851 = vmul.f32 %v752, %v833
    %v852 = vmul.f32 %v757, %v833
    %v853 = vmul.f32 %v762, %v833
    %v854 = vmul.f32 %v767, %v833
    %v855 = vmul.f32 %v772, %v833
    %v856 = vmul.f32 %v777, %v833
    %v857 = vmul.f32 %v782, %v833
    %v858 = vmul.f32 %v787, %v833
    %v859 = vmul.f32 %v792, %v833
    %v860 = vmul.f32 %v797, %v833
    %v861 = vmul.f32 %v802, %v833
    %v862 = vmul.f32 %v807, %v833
    %v863 = vmul.f32 %v812, %v833
    %v864 = vmul.f32 %v817, %v833
    %v865 = vmul.f32 %v822, %v833
    %v866 = vmul.f32 %v827, %v833
    %v867 = vld [vmem:[%s3] sm:$0x1]
    %v869 = vlaneseq
    %v870 = vshrl.u32 %v869, 7
    %v871 = vsub.s32 0, %v870
    %v872 = vrot.slane %v867, %v871
    %v874 = vadd.f32 %v835, %v872
    %v875 = vadd.f32 %v836, %v872
    %v876 = vadd.f32 %v837, %v872
    %v877 = vadd.f32 %v838, %v872
    %v878 = vadd.f32 %v839, %v872
    %v879 = vadd.f32 %v840, %v872
    %v880 = vadd.f32 %v841, %v872
    %v881 = vadd.f32 %v842, %v872
    %v882 = vadd.f32 %v843, %v872
    %v883 = vadd.f32 %v844, %v872
    %v884 = vadd.f32 %v845, %v872
    %v885 = vadd.f32 %v846, %v872
    %v886 = vadd.f32 %v847, %v872
    %v887 = vadd.f32 %v848, %v872
    %v888 = vadd.f32 %v849, %v872
    %v889 = vadd.f32 %v850, %v872
    %v890 = vadd.f32 %v851, %v872
    %v891 = vadd.f32 %v852, %v872
    %v892 = vadd.f32 %v853, %v872
    %v893 = vadd.f32 %v854, %v872
    %v894 = vadd.f32 %v855, %v872
    %v895 = vadd.f32 %v856, %v872
    %v896 = vadd.f32 %v857, %v872
    %v897 = vadd.f32 %v858, %v872
    %v898 = vadd.f32 %v859, %v872
    %v899 = vadd.f32 %v860, %v872
    %v900 = vadd.f32 %v861, %v872
    %v901 = vadd.f32 %v862, %v872
    %v902 = vadd.f32 %v863, %v872
    %v903 = vadd.f32 %v864, %v872
    %v904 = vadd.f32 %v865, %v872
    %v905 = vadd.f32 %v866, %v872
    %vm906 = vcmp.gt.f32.partialorder %v874, 0.0
    %vm907 = vcmp.gt.f32.partialorder %v875, 0.0
    %vm908 = vcmp.gt.f32.partialorder %v876, 0.0
    %vm909 = vcmp.gt.f32.partialorder %v877, 0.0
    %vm910 = vcmp.gt.f32.partialorder %v878, 0.0
    %vm911 = vcmp.gt.f32.partialorder %v879, 0.0
    %vm912 = vcmp.gt.f32.partialorder %v880, 0.0
    %vm913 = vcmp.gt.f32.partialorder %v881, 0.0
    %vm914 = vcmp.gt.f32.partialorder %v882, 0.0
    %vm915 = vcmp.gt.f32.partialorder %v883, 0.0
    %vm916 = vcmp.gt.f32.partialorder %v884, 0.0
    %vm917 = vcmp.gt.f32.partialorder %v885, 0.0
    %vm918 = vcmp.gt.f32.partialorder %v886, 0.0
    %vm919 = vcmp.gt.f32.partialorder %v887, 0.0
    %vm920 = vcmp.gt.f32.partialorder %v888, 0.0
    %vm921 = vcmp.gt.f32.partialorder %v889, 0.0
    %vm922 = vcmp.gt.f32.partialorder %v890, 0.0
    %vm923 = vcmp.gt.f32.partialorder %v891, 0.0
    %vm924 = vcmp.gt.f32.partialorder %v892, 0.0
    %vm925 = vcmp.gt.f32.partialorder %v893, 0.0
    %vm926 = vcmp.gt.f32.partialorder %v894, 0.0
    %vm927 = vcmp.gt.f32.partialorder %v895, 0.0
    %vm928 = vcmp.gt.f32.partialorder %v896, 0.0
    %vm929 = vcmp.gt.f32.partialorder %v897, 0.0
    %vm930 = vcmp.gt.f32.partialorder %v898, 0.0
    %vm931 = vcmp.gt.f32.partialorder %v899, 0.0
    %vm932 = vcmp.gt.f32.partialorder %v900, 0.0
    %vm933 = vcmp.gt.f32.partialorder %v901, 0.0
    %vm934 = vcmp.gt.f32.partialorder %v902, 0.0
    %vm935 = vcmp.gt.f32.partialorder %v903, 0.0
    %vm936 = vcmp.gt.f32.partialorder %v904, 0.0
    %vm937 = vcmp.gt.f32.partialorder %v905, 0.0
    %v938 = vmul.f32 %v874, 0.01
    %v939 = vmul.f32 %v875, 0.01
    %v940 = vmul.f32 %v876, 0.01
    %v941 = vmul.f32 %v877, 0.01
    %v942 = vmul.f32 %v878, 0.01
    %v943 = vmul.f32 %v879, 0.01
    %v944 = vmul.f32 %v880, 0.01
    %v945 = vmul.f32 %v881, 0.01
    %v946 = vmul.f32 %v882, 0.01
    %v947 = vmul.f32 %v883, 0.01
    %v948 = vmul.f32 %v884, 0.01
    %v949 = vmul.f32 %v885, 0.01
    %v950 = vmul.f32 %v886, 0.01
    %v951 = vmul.f32 %v887, 0.01
    %v952 = vmul.f32 %v888, 0.01
    %v953 = vmul.f32 %v889, 0.01
    %v954 = vmul.f32 %v890, 0.01
    %v955 = vmul.f32 %v891, 0.01
    %v956 = vmul.f32 %v892, 0.01
    %v957 = vmul.f32 %v893, 0.01
    %v958 = vmul.f32 %v894, 0.01
    %v959 = vmul.f32 %v895, 0.01
    %v960 = vmul.f32 %v896, 0.01
    %v961 = vmul.f32 %v897, 0.01
    %v962 = vmul.f32 %v898, 0.01
    %v963 = vmul.f32 %v899, 0.01
    %v964 = vmul.f32 %v900, 0.01
    %v965 = vmul.f32 %v901, 0.01
    %v966 = vmul.f32 %v902, 0.01
    %v967 = vmul.f32 %v903, 0.01
    %v968 = vmul.f32 %v904, 0.01
    %v969 = vmul.f32 %v905, 0.01
    %v970 = vsel %vm906, %v874, %v938
    %v971 = vsel %vm907, %v875, %v939
    %v972 = vsel %vm908, %v876, %v940
    %v973 = vsel %vm909, %v877, %v941
    %v974 = vsel %vm910, %v878, %v942
    %v975 = vsel %vm911, %v879, %v943
    %v976 = vsel %vm912, %v880, %v944
    %v977 = vsel %vm913, %v881, %v945
    %v978 = vsel %vm914, %v882, %v946
    %v979 = vsel %vm915, %v883, %v947
    %v980 = vsel %vm916, %v884, %v948
    %v981 = vsel %vm917, %v885, %v949
    %v982 = vsel %vm918, %v886, %v950
    %v983 = vsel %vm919, %v887, %v951
    %v984 = vsel %vm920, %v888, %v952
    %v985 = vsel %vm921, %v889, %v953
    %v986 = vsel %vm922, %v890, %v954
    %v987 = vsel %vm923, %v891, %v955
    %v988 = vsel %vm924, %v892, %v956
    %v989 = vsel %vm925, %v893, %v957
    %v990 = vsel %vm926, %v894, %v958
    %v991 = vsel %vm927, %v895, %v959
    %v992 = vsel %vm928, %v896, %v960
    %v993 = vsel %vm929, %v897, %v961
    %v994 = vsel %vm930, %v898, %v962
    %v995 = vsel %vm931, %v899, %v963
    %v996 = vsel %vm932, %v900, %v964
    %v997 = vsel %vm933, %v901, %v965
    %v998 = vsel %vm934, %v902, %v966
    %v999 = vsel %vm935, %v903, %v967
    %v1000 = vsel %vm936, %v904, %v968
    %v1001 = vsel %vm937, %v905, %v969
    %vm1002 = vcmask 39936
    %1003 = vst.msk [vmem:[%s4] sm:$0xff] %vm1002, %v970
    %1004 = vst.msk [vmem:[%s4 + $0x8] sm:$0xff] %vm1002, %v971
    %1005 = vst.msk [vmem:[%s4 + $0x10] sm:$0xff] %vm1002, %v972
    %1006 = vst.msk [vmem:[%s4 + $0x18] sm:$0xff] %vm1002, %v973
    %1007 = vst.msk [vmem:[%s4 + $0x20] sm:$0xff] %vm1002, %v974
    %1008 = vst.msk [vmem:[%s4 + $0x28] sm:$0xff] %vm1002, %v975
    %1009 = vst.msk [vmem:[%s4 + $0x30] sm:$0xff] %vm1002, %v976
    %1010 = vst.msk [vmem:[%s4 + $0x38] sm:$0xff] %vm1002, %v977
    %1011 = vst.msk [vmem:[%s4 + $0x40] sm:$0xff] %vm1002, %v978
    %1012 = vst.msk [vmem:[%s4 + $0x48] sm:$0xff] %vm1002, %v979
    %1013 = vst.msk [vmem:[%s4 + $0x50] sm:$0xff] %vm1002, %v980
    %1014 = vst.msk [vmem:[%s4 + $0x58] sm:$0xff] %vm1002, %v981
    %1015 = vst.msk [vmem:[%s4 + $0x60] sm:$0xff] %vm1002, %v982
    %1016 = vst.msk [vmem:[%s4 + $0x68] sm:$0xff] %vm1002, %v983
    %1017 = vst.msk [vmem:[%s4 + $0x70] sm:$0xff] %vm1002, %v984
    %1018 = vst.msk [vmem:[%s4 + $0x78] sm:$0xff] %vm1002, %v985
    %1019 = vst.msk [vmem:[%s4 + $0x80] sm:$0xff] %vm1002, %v986
    %1020 = vst.msk [vmem:[%s4 + $0x88] sm:$0xff] %vm1002, %v987
    %1021 = vst.msk [vmem:[%s4 + $0x90] sm:$0xff] %vm1002, %v988
    %1022 = vst.msk [vmem:[%s4 + $0x98] sm:$0xff] %vm1002, %v989
    %1023 = vst.msk [vmem:[%s4 + $0xa0] sm:$0xff] %vm1002, %v990
    %1024 = vst.msk [vmem:[%s4 + $0xa8] sm:$0xff] %vm1002, %v991
    %1025 = vst.msk [vmem:[%s4 + $0xb0] sm:$0xff] %vm1002, %v992
    %1026 = vst.msk [vmem:[%s4 + $0xb8] sm:$0xff] %vm1002, %v993
    %1027 = vst.msk [vmem:[%s4 + $0xc0] sm:$0xff] %vm1002, %v994
    %1028 = vst.msk [vmem:[%s4 + $0xc8] sm:$0xff] %vm1002, %v995
    %1029 = vst.msk [vmem:[%s4 + $0xd0] sm:$0xff] %vm1002, %v996
    %1030 = vst.msk [vmem:[%s4 + $0xd8] sm:$0xff] %vm1002, %v997
    %1031 = vst.msk [vmem:[%s4 + $0xe0] sm:$0xff] %vm1002, %v998
    %1032 = vst.msk [vmem:[%s4 + $0xe8] sm:$0xff] %vm1002, %v999
    %1033 = vst.msk [vmem:[%s4 + $0xf0] sm:$0xff] %vm1002, %v1000
    %1034 = vst.msk [vmem:[%s4 + $0xf8] sm:$0xff] %vm1002, %v1001
  $region25: #{net_conv_forward.2} parent=0 // pred_fallthru
    _
  // Predicated region
  $region26: #{net_conv_forward.2} parent=0 // pred_check
    _
  $region27: #{net_conv_forward.2} parent=0 // pred_check_branch
    %1036 = sbr.rel (0) target = $region29
  $region28: #{net_conv_forward.2} parent=0 // pred_region
    _
  $region29: #{net_conv_forward.2} parent=0 // pred_fallthru
    _
  // Predicated region
  $region30: #{net_conv_forward.2} parent=0 // pred_check
    _
  $region31: #{net_conv_forward.2} parent=0 // pred_check_branch
    %1038 = sbr.rel (0) target = $region33
  $region32: #{net_conv_forward.2} parent=0 // pred_region
    _
  $region33: #{net_conv_forward.2} parent=0 // pred_fallthru
    _

// kernel: net_conv_forward.3
$region0: #{net_conv_forward.3}
  #allocation0 [shape = 'u32[]', space=smem, size = 0x4, offset = 0x4, fixed_abs, tag = 'smem constant byte address 0x4 - core index']
  #allocation1 [shape = 'u32[144,128]{1,0:T(1,128)}', space=vmem, size = 0x12000, scoped, tag = 'internal scratch']
  #allocation2 [shape = 'f32[512,5]{1,0:T(8,128)}', space=vmem, size = 0x40000, scoped, tag = 'scratch operand']
  #allocation3 [shape = 'f32[512,5]{1,0:T(8,128)}', space=vmem, size = 0x40000, scoped, tag = 'scratch operand']
  #allocation4 [shape = 's32[1]{0}', space=sflag, size = 0x4, scoped, tag = 'scoped memory for net_conv_forward.3']
  #allocation5 [shape = 'u8[2048]{0}', space=smem, size = 0x800, scoped, tag = 'prefetched SMEM operand 0']
  #allocation6 [shape = 'u8[2048]{0}', space=smem, size = 0x800, scoped, tag = 'prefetched SMEM operand 1']
  %s0 = inlined_call_operand.vmem [shape: s32[512], index: 0, kind: input, shape index: {}]
  %s1 = inlined_call_operand.vmem [shape: s32[512], index: 1, kind: input, shape index: {}]
  %s2 = inlined_call_operand.vmem [shape: f32[256,5], index: 2, kind: input, shape index: {}]
  %s3 = inlined_call_operand.vmem [shape: f32[2,5], index: 3, kind: input, shape index: {}]
  %s4 = inlined_call_operand.vmem [shape: f32[2,5], index: 4, kind: input, shape index: {}]
  %s5 = inlined_call_operand.vmem [shape: f32[2,1], index: 5, kind: input, shape index: {}]
  %s6 = inlined_call_operand.vmem [shape: f32[2,512], index: 6, kind: output, shape index: {}]
  %s7 = sld [smem:[#allocation0]]
  $region33: #{net_conv_forward.3} parent=0
    _
  %s9 = ssub.s32 1, %s7
  %s10 = scalar_select 0, %s9, %s7
  %s11 = sshll.u32 %s0, 4
  %s12 = int_to_ptr.vmem [resolvable:$true] %s11
  %14 = dma.vmem_to_smem %s12, 64, [#allocation5], [#allocation4]
  %s15 = sshll.u32 %s1, 4
  %s16 = int_to_ptr.vmem [resolvable:$true] %s15
  %18 = dma.vmem_to_smem %s16, 64, [#allocation6], [#allocation4]
  %19 = dma.done [#allocation4], 128
  %20 = sfence
  // Predicated region
  $region2: #{net_conv_forward.3} parent=0 // pred_check
    _
  $region3: #{net_conv_forward.3} parent=0 // pred_check_branch
    %22 = sbr.rel (0) target = $region5
  $region4: #{net_conv_forward.3} parent=0 // pred_region
    _
  $region5: #{net_conv_forward.3} parent=0 // pred_fallthru
    _
  // Predicated region
  $region6: #{net_conv_forward.3} parent=0 // pred_check
    _
  $region7: #{net_conv_forward.3} parent=0 // pred_check_branch
    %24 = sbr.rel (0) target = $region9
  $region8: #{net_conv_forward.3} parent=0 // pred_region
    _
  $region9: #{net_conv_forward.3} parent=0 // pred_fallthru
    _
  // Predicated region
  $region10: #{net_conv_forward.3} parent=0 // pred_check
    _
  $region11: #{net_conv_forward.3} parent=0 // pred_check_branch
    %26 = sbr.rel (0) target = $region13
  $region12: #{net_conv_forward.3} parent=0 // pred_region
    _
  $region13: #{net_conv_forward.3} parent=0 // pred_fallthru
    _
  // Predicated region
  $region14: #{net_conv_forward.3} parent=0 // pred_check
    _
  $region15: #{net_conv_forward.3} parent=0 // pred_check_branch
    %28 = sbr.rel (0) target = $region17
  $region16: #{net_conv_forward.3} parent=0 // pred_region
    _
  $region17: #{net_conv_forward.3} parent=0 // pred_fallthru
    _
  %s29 = smul.u32 0, 512
  loop: start=0, step=1, limit=64
  $region18: #{net_conv_forward.3} parent=0 // loop_pre_header
    _
  $region19: #{net_conv_forward.3} parent=0 // loop_header
    %s31 = sphi 0, %s35
    %p32 = scmp.ge.s32.totalorder %s31, 64
  $region20: #{net_conv_forward.3} parent=0 // loop_header_branch
    %34 = sbr.rel (%p32) target = $region24
  $region21: #{net_conv_forward.3} parent=0 // loop_body
    %s36 = smul.u32 %s31, 8
    %s37 = sadd.s32 %s29, %s36
    %s38 = sld [smem:[#allocation5 + %s37]]
    %s39 = sld [smem:[#allocation6 + %s37]]
    %s40 = scalar_lea.vmem %s2, %s38
    %v41 = vld [vmem:[%s40] sm:$0x1]
    %s42 = scalar_lea.vmem [#allocation3], %s36
    %vm43 = vcmask 32768
    %44 = vst.msk [vmem:[%s42] sm:$0x1] %vm43, %v41
    %s45 = scalar_lea.vmem %s2, %s39
    %v46 = vld [vmem:[%s45] sm:$0x1]
    %s47 = scalar_lea.vmem [#allocation2], %s36
    %48 = vst.msk [vmem:[%s47] sm:$0x1] %vm43, %v46
    %s49 = sadd.s32 %s37, 1
    %s50 = sld [smem:[#allocation5 + %s49]]
    %s51 = sld [smem:[#allocation6 + %s49]]
    %s52 = scalar_lea.vmem %s2, %s50
    %v53 = vld [vmem:[%s52] sm:$0x1]
    %s54 = sadd.s32 %s36, 1
    %s55 = scalar_lea.vmem [#allocation3], %s54
    %56 = vst.msk [vmem:[%s55] sm:$0x1] %vm43, %v53
    %s57 = scalar_lea.vmem %s2, %s51
    %v58 = vld [vmem:[%s57] sm:$0x1]
    %s59 = scalar_lea.vmem [#allocation2], %s54
    %60 = vst.msk [vmem:[%s59] sm:$0x1] %vm43, %v58
    %s61 = sadd.s32 %s37, 2
    %s62 = sld [smem:[#allocation5 + %s61]]
    %s63 = sld [smem:[#allocation6 + %s61]]
    %s64 = scalar_lea.vmem %s2, %s62
    %v65 = vld [vmem:[%s64] sm:$0x1]
    %s66 = sadd.s32 %s36, 2
    %s67 = scalar_lea.vmem [#allocation3], %s66
    %68 = vst.msk [vmem:[%s67] sm:$0x1] %vm43, %v65
    %s69 = scalar_lea.vmem %s2, %s63
    %v70 = vld [vmem:[%s69] sm:$0x1]
    %s71 = scalar_lea.vmem [#allocation2], %s66
    %72 = vst.msk [vmem:[%s71] sm:$0x1] %vm43, %v70
    %s73 = sadd.s32 %s37, 3
    %s74 = sld [smem:[#allocation5 + %s73]]
    %s75 = sld [smem:[#allocation6 + %s73]]
    %s76 = scalar_lea.vmem %s2, %s74
    %v77 = vld [vmem:[%s76] sm:$0x1]
    %s78 = sadd.s32 %s36, 3
    %s79 = scalar_lea.vmem [#allocation3], %s78
    %80 = vst.msk [vmem:[%s79] sm:$0x1] %vm43, %v77
    %s81 = scalar_lea.vmem %s2, %s75
    %v82 = vld [vmem:[%s81] sm:$0x1]
    %s83 = scalar_lea.vmem [#allocation2], %s78
    %84 = vst.msk [vmem:[%s83] sm:$0x1] %vm43, %v82
    %s85 = sadd.s32 %s37, 4
    %s86 = sld [smem:[#allocation5 + %s85]]
    %s87 = sld [smem:[#allocation6 + %s85]]
    %s88 = scalar_lea.vmem %s2, %s86
    %v89 = vld [vmem:[%s88] sm:$0x1]
    %s90 = sadd.s32 %s36, 4
    %s91 = scalar_lea.vmem [#allocation3], %s90
    %92 = vst.msk [vmem:[%s91] sm:$0x1] %vm43, %v89
    %s93 = scalar_lea.vmem %s2, %s87
    %v94 = vld [vmem:[%s93] sm:$0x1]
    %s95 = scalar_lea.vmem [#allocation2], %s90
    %96 = vst.msk [vmem:[%s95] sm:$0x1] %vm43, %v94
    %s97 = sadd.s32 %s37, 5
    %s98 = sld [smem:[#allocation5 + %s97]]
    %s99 = sld [smem:[#allocation6 + %s97]]
    %s100 = scalar_lea.vmem %s2, %s98
    %v101 = vld [vmem:[%s100] sm:$0x1]
    %s102 = sadd.s32 %s36, 5
    %s103 = scalar_lea.vmem [#allocation3], %s102
    %104 = vst.msk [vmem:[%s103] sm:$0x1] %vm43, %v101
    %s105 = scalar_lea.vmem %s2, %s99
    %v106 = vld [vmem:[%s105] sm:$0x1]
    %s107 = scalar_lea.vmem [#allocation2], %s102
    %108 = vst.msk [vmem:[%s107] sm:$0x1] %vm43, %v106
    %s109 = sadd.s32 %s37, 6
    %s110 = sld [smem:[#allocation5 + %s109]]
    %s111 = sld [smem:[#allocation6 + %s109]]
    %s112 = scalar_lea.vmem %s2, %s110
    %v113 = vld [vmem:[%s112] sm:$0x1]
    %s114 = sadd.s32 %s36, 6
    %s115 = scalar_lea.vmem [#allocation3], %s114
    %116 = vst.msk [vmem:[%s115] sm:$0x1] %vm43, %v113
    %s117 = scalar_lea.vmem %s2, %s111
    %v118 = vld [vmem:[%s117] sm:$0x1]
    %s119 = scalar_lea.vmem [#allocation2], %s114
    %120 = vst.msk [vmem:[%s119] sm:$0x1] %vm43, %v118
    %s121 = sadd.s32 %s37, 7
    %s122 = sld [smem:[#allocation5 + %s121]]
    %s123 = sld [smem:[#allocation6 + %s121]]
    %s124 = scalar_lea.vmem %s2, %s122
    %v125 = vld [vmem:[%s124] sm:$0x1]
    %s126 = sadd.s32 %s36, 7
    %s127 = scalar_lea.vmem [#allocation3], %s126
    %128 = vst.msk [vmem:[%s127] sm:$0x1] %vm43, %v125
    %s129 = scalar_lea.vmem %s2, %s123
    %v130 = vld [vmem:[%s129] sm:$0x1]
    %s131 = scalar_lea.vmem [#allocation2], %s126
    %132 = vst.msk [vmem:[%s131] sm:$0x1] %vm43, %v130
  $region22: #{net_conv_forward.3} parent=0 // loop_footer
    %s35 = sadd.s32 1, %s31
  $region23: #{net_conv_forward.3} parent=0 // loop_footer_branch
    %30 = sbr.rel target = $region19
  $region24: #{net_conv_forward.3} parent=0 // loop_exit
    _
  %v133 = vld [vmem:[%s3] sm:$0x3]
  %v134 = vld [vmem:[#allocation2] sm:$0xff]
  %v135 = vld [vmem:[#allocation2 + $0x8] sm:$0xff]
  %v136 = vld [vmem:[#allocation2 + $0x10] sm:$0xff]
  %v137 = vld [vmem:[#allocation2 + $0x18] sm:$0xff]
  %v138 = vld [vmem:[#allocation2 + $0x20] sm:$0xff]
  %v139 = vld [vmem:[#allocation2 + $0x28] sm:$0xff]
  %v140 = vld [vmem:[#allocation2 + $0x30] sm:$0xff]
  %v141 = vld [vmem:[#allocation2 + $0x38] sm:$0xff]
  %v142 = vld [vmem:[#allocation2 + $0x40] sm:$0xff]
  %v143 = vld [vmem:[#allocation2 + $0x48] sm:$0xff]
  %v144 = vld [vmem:[#allocation2 + $0x50] sm:$0xff]
  %v145 = vld [vmem:[#allocation2 + $0x58] sm:$0xff]
  %v146 = vld [vmem:[#allocation2 + $0x60] sm:$0xff]
  %v147 = vld [vmem:[#allocation2 + $0x68] sm:$0xff]
  %v148 = vld [vmem:[#allocation2 + $0x70] sm:$0xff]
  %v149 = vld [vmem:[#allocation2 + $0x78] sm:$0xff]
  %v150 = vld [vmem:[#allocation2 + $0x80] sm:$0xff]
  %v151 = vld [vmem:[#allocation2 + $0x88] sm:$0xff]
  %v152 = vld [vmem:[#allocation2 + $0x90] sm:$0xff]
  %v153 = vld [vmem:[#allocation2 + $0x98] sm:$0xff]
  %v154 = vld [vmem:[#allocation2 + $0xa0] sm:$0xff]
  %v155 = vld [vmem:[#allocation2 + $0xa8] sm:$0xff]
  %v156 = vld [vmem:[#allocation2 + $0xb0] sm:$0xff]
  %v157 = vld [vmem:[#allocation2 + $0xb8] sm:$0xff]
  %v158 = vld [vmem:[#allocation2 + $0xc0] sm:$0xff]
  %v159 = vld [vmem:[#allocation2 + $0xc8] sm:$0xff]
  %v160 = vld [vmem:[#allocation2 + $0xd0] sm:$0xff]
  %v161 = vld [vmem:[#allocation2 + $0xd8] sm:$0xff]
  %v162 = vld [vmem:[#allocation2 + $0xe0] sm:$0xff]
  %v163 = vld [vmem:[#allocation2 + $0xe8] sm:$0xff]
  %v164 = vld [vmem:[#allocation2 + $0xf0] sm:$0xff]
  %v165 = vld [vmem:[#allocation2 + $0xf8] sm:$0xff]
  %v166 = vld [vmem:[#allocation2 + $0x100] sm:$0xff]
  %v167 = vld [vmem:[#allocation2 + $0x108] sm:$0xff]
  %v168 = vld [vmem:[#allocation2 + $0x110] sm:$0xff]
  %v169 = vld [vmem:[#allocation2 + $0x118] sm:$0xff]
  %v170 = vld [vmem:[#allocation2 + $0x120] sm:$0xff]
  %v171 = vld [vmem:[#allocation2 + $0x128] sm:$0xff]
  %v172 = vld [vmem:[#allocation2 + $0x130] sm:$0xff]
  %v173 = vld [vmem:[#allocation2 + $0x138] sm:$0xff]
  %v174 = vld [vmem:[#allocation2 + $0x140] sm:$0xff]
  %v175 = vld [vmem:[#allocation2 + $0x148] sm:$0xff]
  %v176 = vld [vmem:[#allocation2 + $0x150] sm:$0xff]
  %v177 = vld [vmem:[#allocation2 + $0x158] sm:$0xff]
  %v178 = vld [vmem:[#allocation2 + $0x160] sm:$0xff]
  %v179 = vld [vmem:[#allocation2 + $0x168] sm:$0xff]
  %v180 = vld [vmem:[#allocation2 + $0x170] sm:$0xff]
  %v181 = vld [vmem:[#allocation2 + $0x178] sm:$0xff]
  %v182 = vld [vmem:[#allocation2 + $0x180] sm:$0xff]
  %v183 = vld [vmem:[#allocation2 + $0x188] sm:$0xff]
  %v184 = vld [vmem:[#allocation2 + $0x190] sm:$0xff]
  %v185 = vld [vmem:[#allocation2 + $0x198] sm:$0xff]
  %v186 = vld [vmem:[#allocation2 + $0x1a0] sm:$0xff]
  %v187 = vld [vmem:[#allocation2 + $0x1a8] sm:$0xff]
  %v188 = vld [vmem:[#allocation2 + $0x1b0] sm:$0xff]
  %v189 = vld [vmem:[#allocation2 + $0x1b8] sm:$0xff]
  %v190 = vld [vmem:[#allocation2 + $0x1c0] sm:$0xff]
  %v191 = vld [vmem:[#allocation2 + $0x1c8] sm:$0xff]
  %v192 = vld [vmem:[#allocation2 + $0x1d0] sm:$0xff]
  %v193 = vld [vmem:[#allocation2 + $0x1d8] sm:$0xff]
  %v194 = vld [vmem:[#allocation2 + $0x1e0] sm:$0xff]
  %v195 = vld [vmem:[#allocation2 + $0x1e8] sm:$0xff]
  %v196 = vld [vmem:[#allocation2 + $0x1f0] sm:$0xff]
  %v197 = vld [vmem:[#allocation2 + $0x1f8] sm:$0xff]
  %v198 = vld [vmem:[%s4] sm:$0x3]
  %v199 = vld [vmem:[#allocation3] sm:$0xff]
  %v200 = vld [vmem:[#allocation3 + $0x8] sm:$0xff]
  %v201 = vld [vmem:[#allocation3 + $0x10] sm:$0xff]
  %v202 = vld [vmem:[#allocation3 + $0x18] sm:$0xff]
  %v203 = vld [vmem:[#allocation3 + $0x20] sm:$0xff]
  %v204 = vld [vmem:[#allocation3 + $0x28] sm:$0xff]
  %v205 = vld [vmem:[#allocation3 + $0x30] sm:$0xff]
  %v206 = vld [vmem:[#allocation3 + $0x38] sm:$0xff]
  %v207 = vld [vmem:[#allocation3 + $0x40] sm:$0xff]
  %v208 = vld [vmem:[#allocation3 + $0x48] sm:$0xff]
  %v209 = vld [vmem:[#allocation3 + $0x50] sm:$0xff]
  %v210 = vld [vmem:[#allocation3 + $0x58] sm:$0xff]
  %v211 = vld [vmem:[#allocation3 + $0x60] sm:$0xff]
  %v212 = vld [vmem:[#allocation3 + $0x68] sm:$0xff]
  %v213 = vld [vmem:[#allocation3 + $0x70] sm:$0xff]
  %v214 = vld [vmem:[#allocation3 + $0x78] sm:$0xff]
  %v215 = vld [vmem:[#allocation3 + $0x80] sm:$0xff]
  %v216 = vld [vmem:[#allocation3 + $0x88] sm:$0xff]
  %v217 = vld [vmem:[#allocation3 + $0x90] sm:$0xff]
  %v218 = vld [vmem:[#allocation3 + $0x98] sm:$0xff]
  %v219 = vld [vmem:[#allocation3 + $0xa0] sm:$0xff]
  %v220 = vld [vmem:[#allocation3 + $0xa8] sm:$0xff]
  %v221 = vld [vmem:[#allocation3 + $0xb0] sm:$0xff]
  %v222 = vld [vmem:[#allocation3 + $0xb8] sm:$0xff]
  %v223 = vld [vmem:[#allocation3 + $0xc0] sm:$0xff]
  %v224 = vld [vmem:[#allocation3 + $0xc8] sm:$0xff]
  %v225 = vld [vmem:[#allocation3 + $0xd0] sm:$0xff]
  %v226 = vld [vmem:[#allocation3 + $0xd8] sm:$0xff]
  %v227 = vld [vmem:[#allocation3 + $0xe0] sm:$0xff]
  %v228 = vld [vmem:[#allocation3 + $0xe8] sm:$0xff]
  %v229 = vld [vmem:[#allocation3 + $0xf0] sm:$0xff]
  %v230 = vld [vmem:[#allocation3 + $0xf8] sm:$0xff]
  %v231 = vld [vmem:[#allocation3 + $0x100] sm:$0xff]
  %v232 = vld [vmem:[#allocation3 + $0x108] sm:$0xff]
  %v233 = vld [vmem:[#allocation3 + $0x110] sm:$0xff]
  %v234 = vld [vmem:[#allocation3 + $0x118] sm:$0xff]
  %v235 = vld [vmem:[#allocation3 + $0x120] sm:$0xff]
  %v236 = vld [vmem:[#allocation3 + $0x128] sm:$0xff]
  %v237 = vld [vmem:[#allocation3 + $0x130] sm:$0xff]
  %v238 = vld [vmem:[#allocation3 + $0x138] sm:$0xff]
  %v239 = vld [vmem:[#allocation3 + $0x140] sm:$0xff]
  %v240 = vld [vmem:[#allocation3 + $0x148] sm:$0xff]
  %v241 = vld [vmem:[#allocation3 + $0x150] sm:$0xff]
  %v242 = vld [vmem:[#allocation3 + $0x158] sm:$0xff]
  %v243 = vld [vmem:[#allocation3 + $0x160] sm:$0xff]
  %v244 = vld [vmem:[#allocation3 + $0x168] sm:$0xff]
  %v245 = vld [vmem:[#allocation3 + $0x170] sm:$0xff]
  %v246 = vld [vmem:[#allocation3 + $0x178] sm:$0xff]
  %v247 = vld [vmem:[#allocation3 + $0x180] sm:$0xff]
  %v248 = vld [vmem:[#allocation3 + $0x188] sm:$0xff]
  %v249 = vld [vmem:[#allocation3 + $0x190] sm:$0xff]
  %v250 = vld [vmem:[#allocation3 + $0x198] sm:$0xff]
  %v251 = vld [vmem:[#allocation3 + $0x1a0] sm:$0xff]
  %v252 = vld [vmem:[#allocation3 + $0x1a8] sm:$0xff]
  %v253 = vld [vmem:[#allocation3 + $0x1b0] sm:$0xff]
  %v254 = vld [vmem:[#allocation3 + $0x1b8] sm:$0xff]
  %v255 = vld [vmem:[#allocation3 + $0x1c0] sm:$0xff]
  %v256 = vld [vmem:[#allocation3 + $0x1c8] sm:$0xff]
  %v257 = vld [vmem:[#allocation3 + $0x1d0] sm:$0xff]
  %v258 = vld [vmem:[#allocation3 + $0x1d8] sm:$0xff]
  %v259 = vld [vmem:[#allocation3 + $0x1e0] sm:$0xff]
  %v260 = vld [vmem:[#allocation3 + $0x1e8] sm:$0xff]
  %v261 = vld [vmem:[#allocation3 + $0x1f0] sm:$0xff]
  %v262 = vld [vmem:[#allocation3 + $0x1f8] sm:$0xff]
  %vm263 = vcmask 39936
  %v265 = vsel %vm263, %v198, 0
  %v268 = vsel %vm263, %v199, 0
  %v271 = vsel %vm263, %v200, 0
  %v274 = vsel %vm263, %v201, 0
  %v277 = vsel %vm263, %v202, 0
  %v280 = vsel %vm263, %v203, 0
  %v283 = vsel %vm263, %v204, 0
  %v286 = vsel %vm263, %v205, 0
  %v289 = vsel %vm263, %v206, 0
  %v292 = vsel %vm263, %v207, 0
  %v295 = vsel %vm263, %v208, 0
  %v298 = vsel %vm263, %v209, 0
  %v301 = vsel %vm263, %v210, 0
  %v304 = vsel %vm263, %v211, 0
  %v307 = vsel %vm263, %v212, 0
  %v310 = vsel %vm263, %v213, 0
  %v313 = vsel %vm263, %v214, 0
  %v316 = vsel %vm263, %v215, 0
  %v319 = vsel %vm263, %v216, 0
  %v322 = vsel %vm263, %v217, 0
  %v325 = vsel %vm263, %v218, 0
  %v328 = vsel %vm263, %v219, 0
  %v331 = vsel %vm263, %v220, 0
  %v334 = vsel %vm263, %v221, 0
  %v337 = vsel %vm263, %v222, 0
  %v340 = vsel %vm263, %v223, 0
  %v343 = vsel %vm263, %v224, 0
  %v346 = vsel %vm263, %v225, 0
  %v349 = vsel %vm263, %v226, 0
  %v352 = vsel %vm263, %v227, 0
  %v355 = vsel %vm263, %v228, 0
  %v358 = vsel %vm263, %v229, 0
  %v361 = vsel %vm263, %v230, 0
  %v364 = vsel %vm263, %v231, 0
  %v367 = vsel %vm263, %v232, 0
  %v370 = vsel %vm263, %v233, 0
  %v373 = vsel %vm263, %v234, 0
  %v376 = vsel %vm263, %v235, 0
  %v379 = vsel %vm263, %v236, 0
  %v382 = vsel %vm263, %v237, 0
  %v385 = vsel %vm263, %v238, 0
  %v388 = vsel %vm263, %v239, 0
  %v391 = vsel %vm263, %v240, 0
  %v394 = vsel %vm263, %v241, 0
  %v397 = vsel %vm263, %v242, 0
  %v400 = vsel %vm263, %v243, 0
  %v403 = vsel %vm263, %v244, 0
  %v406 = vsel %vm263, %v245, 0
  %v409 = vsel %vm263, %v246, 0
  %v412 = vsel %vm263, %v247, 0
  %v415 = vsel %vm263, %v248, 0
  %v418 = vsel %vm263, %v249, 0
  %v421 = vsel %vm263, %v250, 0
  %v424 = vsel %vm263, %v251, 0
  %v427 = vsel %vm263, %v252, 0
  %v430 = vsel %vm263, %v253, 0
  %v433 = vsel %vm263, %v254, 0
  %v436 = vsel %vm263, %v255, 0
  %v439 = vsel %vm263, %v256, 0
  %v442 = vsel %vm263, %v257, 0
  %v445 = vsel %vm263, %v258, 0
  %v448 = vsel %vm263, %v259, 0
  %v451 = vsel %vm263, %v260, 0
  %v454 = vsel %vm263, %v261, 0
  %v457 = vsel %vm263, %v262, 0
  %459 = vmatprep.subr.mxu0 0.0
  %460 = vmatpush1.xpose.msra.mxu0 %v268
  %461 = vmatprep.subr.mxu0 0.0
  %462 = vmatpush1.xpose.msra.mxu0 %v271
  %463 = vmatprep.subr.mxu0 0.0
  %464 = vmatpush1.xpose.msra.mxu0 %v274
  %465 = vmatprep.subr.mxu0 0.0
  %466 = vmatpush1.xpose.msra.mxu0 %v277
  %467 = vmatprep.subr.mxu0 0.0
  %468 = vmatpush1.xpose.msra.mxu0 %v280
  %469 = vmatprep.subr.mxu0 0.0
  %470 = vmatpush1.xpose.msra.mxu0 %v283
  %471 = vmatprep.subr.mxu0 0.0
  %472 = vmatpush1.xpose.msra.mxu0 %v286
  %473 = vmatprep.subr.mxu0 0.0
  %474 = vmatpush1.xpose.msra.mxu0 %v289
  %475 = vmatprep.subr.mxu0 0.0
  %476 = vmatpush1.xpose.msra.mxu0 %v292
  %477 = vmatprep.subr.mxu0 0.0
  %478 = vmatpush1.xpose.msra.mxu0 %v295
  %479 = vmatprep.subr.mxu0 0.0
  %480 = vmatpush1.xpose.msra.mxu0 %v298
  %481 = vmatprep.subr.mxu0 0.0
  %482 = vmatpush1.xpose.msra.mxu0 %v301
  %483 = vmatprep.subr.mxu0 0.0
  %484 = vmatpush1.xpose.msra.mxu0 %v304
  %485 = vmatprep.subr.mxu0 0.0
  %486 = vmatpush1.xpose.msra.mxu0 %v307
  %487 = vmatprep.subr.mxu0 0.0
  %488 = vmatpush1.xpose.msra.mxu0 %v310
  %489 = vmatprep.subr.mxu0 0.0
  %490 = vmatpush1.xpose.msra.mxu0 %v313
  %491 = vmatprep.subr.mxu0 0.0
  %492 = vmatpush1.xpose.msra.mxu0 %v316
  %493 = vmatprep.subr.mxu0 0.0
  %494 = vmatpush1.xpose.msra.mxu0 %v319
  %495 = vmatprep.subr.mxu0 0.0
  %496 = vmatpush1.xpose.msra.mxu0 %v322
  %497 = vmatprep.subr.mxu0 0.0
  %498 = vmatpush1.xpose.msra.mxu0 %v325
  %499 = vmatprep.subr.mxu0 0.0
  %500 = vmatpush1.xpose.msra.mxu0 %v328
  %501 = vmatprep.subr.mxu0 0.0
  %502 = vmatpush1.xpose.msra.mxu0 %v331
  %503 = vmatprep.subr.mxu0 0.0
  %504 = vmatpush1.xpose.msra.mxu0 %v334
  %505 = vmatprep.subr.mxu0 0.0
  %506 = vmatpush1.xpose.msra.mxu0 %v337
  %507 = vmatprep.subr.mxu0 0.0
  %508 = vmatpush1.xpose.msra.mxu0 %v340
  %509 = vmatprep.subr.mxu0 0.0
  %510 = vmatpush1.xpose.msra.mxu0 %v343
  %511 = vmatprep.subr.mxu0 0.0
  %512 = vmatpush1.xpose.msra.mxu0 %v346
  %513 = vmatprep.subr.mxu0 0.0
  %514 = vmatpush1.xpose.msra.mxu0 %v349
  %515 = vmatprep.subr.mxu0 0.0
  %516 = vmatpush1.xpose.msra.mxu0 %v352
  %517 = vmatprep.subr.mxu0 0.0
  %518 = vmatpush1.xpose.msra.mxu0 %v355
  %519 = vmatprep.subr.mxu0 0.0
  %520 = vmatpush1.xpose.msra.mxu0 %v358
  %521 = vmatprep.subr.mxu0 0.0
  %522 = vmatpush1.xpose.msra.mxu0 %v361
  %523 = vmatprep.mubr.f32.mxu0 0.0
  %524 = vmatmul.mubr.f32.gmra.mrb[0].mxu0 %v265
  %v525 = vpop.f32.mrb[0].mxu0
  %v526 = vadd.f32 0.0, %v525
  %v527 = vpop.f32.mrb[0].mxu0
  %v528 = vadd.f32 0.0, %v527
  %529 = vdwg.mxu0
  %530 = vmatprep.subr.mxu0 0.0
  %531 = vmatpush1.xpose.msra.mxu0 %v364
  %532 = vmatprep.subr.mxu0 0.0
  %533 = vmatpush1.xpose.msra.mxu0 %v367
  %534 = vmatprep.subr.mxu0 0.0
  %535 = vmatpush1.xpose.msra.mxu0 %v370
  %536 = vmatprep.subr.mxu0 0.0
  %537 = vmatpush1.xpose.msra.mxu0 %v373
  %538 = vmatprep.subr.mxu0 0.0
  %539 = vmatpush1.xpose.msra.mxu0 %v376
  %540 = vmatprep.subr.mxu0 0.0
  %541 = vmatpush1.xpose.msra.mxu0 %v379
  %542 = vmatprep.subr.mxu0 0.0
  %543 = vmatpush1.xpose.msra.mxu0 %v382
  %544 = vmatprep.subr.mxu0 0.0
  %545 = vmatpush1.xpose.msra.mxu0 %v385
  %546 = vmatprep.subr.mxu0 0.0
  %547 = vmatpush1.xpose.msra.mxu0 %v388
  %548 = vmatprep.subr.mxu0 0.0
  %549 = vmatpush1.xpose.msra.mxu0 %v391
  %550 = vmatprep.subr.mxu0 0.0
  %551 = vmatpush1.xpose.msra.mxu0 %v394
  %552 = vmatprep.subr.mxu0 0.0
  %553 = vmatpush1.xpose.msra.mxu0 %v397
  %554 = vmatprep.subr.mxu0 0.0
  %555 = vmatpush1.xpose.msra.mxu0 %v400
  %556 = vmatprep.subr.mxu0 0.0
  %557 = vmatpush1.xpose.msra.mxu0 %v403
  %558 = vmatprep.subr.mxu0 0.0
  %559 = vmatpush1.xpose.msra.mxu0 %v406
  %560 = vmatprep.subr.mxu0 0.0
  %561 = vmatpush1.xpose.msra.mxu0 %v409
  %562 = vmatprep.subr.mxu0 0.0
  %563 = vmatpush1.xpose.msra.mxu0 %v412
  %564 = vmatprep.subr.mxu0 0.0
  %565 = vmatpush1.xpose.msra.mxu0 %v415
  %566 = vmatprep.subr.mxu0 0.0
  %567 = vmatpush1.xpose.msra.mxu0 %v418
  %568 = vmatprep.subr.mxu0 0.0
  %569 = vmatpush1.xpose.msra.mxu0 %v421
  %570 = vmatprep.subr.mxu0 0.0
  %571 = vmatpush1.xpose.msra.mxu0 %v424
  %572 = vmatprep.subr.mxu0 0.0
  %573 = vmatpush1.xpose.msra.mxu0 %v427
  %574 = vmatprep.subr.mxu0 0.0
  %575 = vmatpush1.xpose.msra.mxu0 %v430
  %576 = vmatprep.subr.mxu0 0.0
  %577 = vmatpush1.xpose.msra.mxu0 %v433
  %578 = vmatprep.subr.mxu0 0.0
  %579 = vmatpush1.xpose.msra.mxu0 %v436
  %580 = vmatprep.subr.mxu0 0.0
  %581 = vmatpush1.xpose.msra.mxu0 %v439
  %582 = vmatprep.subr.mxu0 0.0
  %583 = vmatpush1.xpose.msra.mxu0 %v442
  %584 = vmatprep.subr.mxu0 0.0
  %585 = vmatpush1.xpose.msra.mxu0 %v445
  %586 = vmatprep.subr.mxu0 0.0
  %587 = vmatpush1.xpose.msra.mxu0 %v448
  %588 = vmatprep.subr.mxu0 0.0
  %589 = vmatpush1.xpose.msra.mxu0 %v451
  %590 = vmatprep.subr.mxu0 0.0
  %591 = vmatpush1.xpose.msra.mxu0 %v454
  %592 = vmatprep.subr.mxu0 0.0
  %593 = vmatpush1.xpose.msra.mxu0 %v457
  %594 = vmatprep.mubr.f32.mxu0 0.0
  %595 = vmatmul.mubr.f32.gmra.mrb[0].mxu0 %v265
  %v596 = vpop.f32.mrb[0].mxu0
  %v597 = vadd.f32 0.0, %v596
  %v598 = vpop.f32.mrb[0].mxu0
  %v599 = vadd.f32 0.0, %v598
  %600 = vdwg.mxu0
  %v602 = vsel %vm263, %v133, 0
  %v605 = vsel %vm263, %v134, 0
  %v608 = vsel %vm263, %v135, 0
  %v611 = vsel %vm263, %v136, 0
  %v614 = vsel %vm263, %v137, 0
  %v617 = vsel %vm263, %v138, 0
  %v620 = vsel %vm263, %v139, 0
  %v623 = vsel %vm263, %v140, 0
  %v626 = vsel %vm263, %v141, 0
  %v629 = vsel %vm263, %v142, 0
  %v632 = vsel %vm263, %v143, 0
  %v635 = vsel %vm263, %v144, 0
  %v638 = vsel %vm263, %v145, 0
  %v641 = vsel %vm263, %v146, 0
  %v644 = vsel %vm263, %v147, 0
  %v647 = vsel %vm263, %v148, 0
  %v650 = vsel %vm263, %v149, 0
  %v653 = vsel %vm263, %v150, 0
  %v656 = vsel %vm263, %v151, 0
  %v659 = vsel %vm263, %v152, 0
  %v662 = vsel %vm263, %v153, 0
  %v665 = vsel %vm263, %v154, 0
  %v668 = vsel %vm263, %v155, 0
  %v671 = vsel %vm263, %v156, 0
  %v674 = vsel %vm263, %v157, 0
  %v677 = vsel %vm263, %v158, 0
  %v680 = vsel %vm263, %v159, 0
  %v683 = vsel %vm263, %v160, 0
  %v686 = vsel %vm263, %v161, 0
  %v689 = vsel %vm263, %v162, 0
  %v692 = vsel %vm263, %v163, 0
  %v695 = vsel %vm263, %v164, 0
  %v698 = vsel %vm263, %v165, 0
  %v701 = vsel %vm263, %v166, 0
  %v704 = vsel %vm263, %v167, 0
  %v707 = vsel %vm263, %v168, 0
  %v710 = vsel %vm263, %v169, 0
  %v713 = vsel %vm263, %v170, 0
  %v716 = vsel %vm263, %v171, 0
  %v719 = vsel %vm263, %v172, 0
  %v722 = vsel %vm263, %v173, 0
  %v725 = vsel %vm263, %v174, 0
  %v728 = vsel %vm263, %v175, 0
  %v731 = vsel %vm263, %v176, 0
  %v734 = vsel %vm263, %v177, 0
  %v737 = vsel %vm263, %v178, 0
  %v740 = vsel %vm263, %v179, 0
  %v743 = vsel %vm263, %v180, 0
  %v746 = vsel %vm263, %v181, 0
  %v749 = vsel %vm263, %v182, 0
  %v752 = vsel %vm263, %v183, 0
  %v755 = vsel %vm263, %v184, 0
  %v758 = vsel %vm263, %v185, 0
  %v761 = vsel %vm263, %v186, 0
  %v764 = vsel %vm263, %v187, 0
  %v767 = vsel %vm263, %v188, 0
  %v770 = vsel %vm263, %v189, 0
  %v773 = vsel %vm263, %v190, 0
  %v776 = vsel %vm263, %v191, 0
  %v779 = vsel %vm263, %v192, 0
  %v782 = vsel %vm263, %v193, 0
  %v785 = vsel %vm263, %v194, 0
  %v788 = vsel %vm263, %v195, 0
  %v791 = vsel %vm263, %v196, 0
  %v794 = vsel %vm263, %v197, 0
  %796 = vmatprep.subr.mxu0 0.0
  %797 = vmatpush1.xpose.msra.mxu0 %v605
  %798 = vmatprep.subr.mxu0 0.0
  %799 = vmatpush1.xpose.msra.mxu0 %v608
  %800 = vmatprep.subr.mxu0 0.0
  %801 = vmatpush1.xpose.msra.mxu0 %v611
  %802 = vmatprep.subr.mxu0 0.0
  %803 = vmatpush1.xpose.msra.mxu0 %v614
  %804 = vmatprep.subr.mxu0 0.0
  %805 = vmatpush1.xpose.msra.mxu0 %v617
  %806 = vmatprep.subr.mxu0 0.0
  %807 = vmatpush1.xpose.msra.mxu0 %v620
  %808 = vmatprep.subr.mxu0 0.0
  %809 = vmatpush1.xpose.msra.mxu0 %v623
  %810 = vmatprep.subr.mxu0 0.0
  %811 = vmatpush1.xpose.msra.mxu0 %v626
  %812 = vmatprep.subr.mxu0 0.0
  %813 = vmatpush1.xpose.msra.mxu0 %v629
  %814 = vmatprep.subr.mxu0 0.0
  %815 = vmatpush1.xpose.msra.mxu0 %v632
  %816 = vmatprep.subr.mxu0 0.0
  %817 = vmatpush1.xpose.msra.mxu0 %v635
  %818 = vmatprep.subr.mxu0 0.0
  %819 = vmatpush1.xpose.msra.mxu0 %v638
  %820 = vmatprep.subr.mxu0 0.0
  %821 = vmatpush1.xpose.msra.mxu0 %v641
  %822 = vmatprep.subr.mxu0 0.0
  %823 = vmatpush1.xpose.msra.mxu0 %v644
  %824 = vmatprep.subr.mxu0 0.0
  %825 = vmatpush1.xpose.msra.mxu0 %v647
  %826 = vmatprep.subr.mxu0 0.0
  %827 = vmatpush1.xpose.msra.mxu0 %v650
  %828 = vmatprep.subr.mxu0 0.0
  %829 = vmatpush1.xpose.msra.mxu0 %v653
  %830 = vmatprep.subr.mxu0 0.0
  %831 = vmatpush1.xpose.msra.mxu0 %v656
  %832 = vmatprep.subr.mxu0 0.0
  %833 = vmatpush1.xpose.msra.mxu0 %v659
  %834 = vmatprep.subr.mxu0 0.0
  %835 = vmatpush1.xpose.msra.mxu0 %v662
  %836 = vmatprep.subr.mxu0 0.0
  %837 = vmatpush1.xpose.msra.mxu0 %v665
  %838 = vmatprep.subr.mxu0 0.0
  %839 = vmatpush1.xpose.msra.mxu0 %v668
  %840 = vmatprep.subr.mxu0 0.0
  %841 = vmatpush1.xpose.msra.mxu0 %v671
  %842 = vmatprep.subr.mxu0 0.0
  %843 = vmatpush1.xpose.msra.mxu0 %v674
  %844 = vmatprep.subr.mxu0 0.0
  %845 = vmatpush1.xpose.msra.mxu0 %v677
  %846 = vmatprep.subr.mxu0 0.0
  %847 = vmatpush1.xpose.msra.mxu0 %v680
  %848 = vmatprep.subr.mxu0 0.0
  %849 = vmatpush1.xpose.msra.mxu0 %v683
  %850 = vmatprep.subr.mxu0 0.0
  %851 = vmatpush1.xpose.msra.mxu0 %v686
  %852 = vmatprep.subr.mxu0 0.0
  %853 = vmatpush1.xpose.msra.mxu0 %v689
  %854 = vmatprep.subr.mxu0 0.0
  %855 = vmatpush1.xpose.msra.mxu0 %v692
  %856 = vmatprep.subr.mxu0 0.0
  %857 = vmatpush1.xpose.msra.mxu0 %v695
  %858 = vmatprep.subr.mxu0 0.0
  %859 = vmatpush1.xpose.msra.mxu0 %v698
  %860 = vmatprep.mubr.f32.mxu0 0.0
  %861 = vmatmul.mubr.f32.gmra.mrb[0].mxu0 %v602
  %v862 = vpop.f32.mrb[0].mxu0
  %v863 = vadd.f32 %v526, %v862
  %v864 = vpop.f32.mrb[0].mxu0
  %v865 = vadd.f32 %v528, %v864
  %866 = vdwg.mxu0
  %867 = vmatprep.subr.mxu0 0.0
  %868 = vmatpush1.xpose.msra.mxu0 %v701
  %869 = vmatprep.subr.mxu0 0.0
  %870 = vmatpush1.xpose.msra.mxu0 %v704
  %871 = vmatprep.subr.mxu0 0.0
  %872 = vmatpush1.xpose.msra.mxu0 %v707
  %873 = vmatprep.subr.mxu0 0.0
  %874 = vmatpush1.xpose.msra.mxu0 %v710
  %875 = vmatprep.subr.mxu0 0.0
  %876 = vmatpush1.xpose.msra.mxu0 %v713
  %877 = vmatprep.subr.mxu0 0.0
  %878 = vmatpush1.xpose.msra.mxu0 %v716
  %879 = vmatprep.subr.mxu0 0.0
  %880 = vmatpush1.xpose.msra.mxu0 %v719
  %881 = vmatprep.subr.mxu0 0.0
  %882 = vmatpush1.xpose.msra.mxu0 %v722
  %883 = vmatprep.subr.mxu0 0.0
  %884 = vmatpush1.xpose.msra.mxu0 %v725
  %885 = vmatprep.subr.mxu0 0.0
  %886 = vmatpush1.xpose.msra.mxu0 %v728
  %887 = vmatprep.subr.mxu0 0.0
  %888 = vmatpush1.xpose.msra.mxu0 %v731
  %889 = vmatprep.subr.mxu0 0.0
  %890 = vmatpush1.xpose.msra.mxu0 %v734
  %891 = vmatprep.subr.mxu0 0.0
  %892 = vmatpush1.xpose.msra.mxu0 %v737
  %893 = vmatprep.subr.mxu0 0.0
  %894 = vmatpush1.xpose.msra.mxu0 %v740
  %895 = vmatprep.subr.mxu0 0.0
  %896 = vmatpush1.xpose.msra.mxu0 %v743
  %897 = vmatprep.subr.mxu0 0.0
  %898 = vmatpush1.xpose.msra.mxu0 %v746
  %899 = vmatprep.subr.mxu0 0.0
  %900 = vmatpush1.xpose.msra.mxu0 %v749
  %901 = vmatprep.subr.mxu0 0.0
  %902 = vmatpush1.xpose.msra.mxu0 %v752
  %903 = vmatprep.subr.mxu0 0.0
  %904 = vmatpush1.xpose.msra.mxu0 %v755
  %905 = vmatprep.subr.mxu0 0.0
  %906 = vmatpush1.xpose.msra.mxu0 %v758
  %907 = vmatprep.subr.mxu0 0.0
  %908 = vmatpush1.xpose.msra.mxu0 %v761
  %909 = vmatprep.subr.mxu0 0.0
  %910 = vmatpush1.xpose.msra.mxu0 %v764
  %911 = vmatprep.subr.mxu0 0.0
  %912 = vmatpush1.xpose.msra.mxu0 %v767
  %913 = vmatprep.subr.mxu0 0.0
  %914 = vmatpush1.xpose.msra.mxu0 %v770
  %915 = vmatprep.subr.mxu0 0.0
  %916 = vmatpush1.xpose.msra.mxu0 %v773
  %917 = vmatprep.subr.mxu0 0.0
  %918 = vmatpush1.xpose.msra.mxu0 %v776
  %919 = vmatprep.subr.mxu0 0.0
  %920 = vmatpush1.xpose.msra.mxu0 %v779
  %921 = vmatprep.subr.mxu0 0.0
  %922 = vmatpush1.xpose.msra.mxu0 %v782
  %923 = vmatprep.subr.mxu0 0.0
  %924 = vmatpush1.xpose.msra.mxu0 %v785
  %925 = vmatprep.subr.mxu0 0.0
  %926 = vmatpush1.xpose.msra.mxu0 %v788
  %927 = vmatprep.subr.mxu0 0.0
  %928 = vmatpush1.xpose.msra.mxu0 %v791
  %929 = vmatprep.subr.mxu0 0.0
  %930 = vmatpush1.xpose.msra.mxu0 %v794
  %931 = vmatprep.mubr.f32.mxu0 0.0
  %932 = vmatmul.mubr.f32.gmra.mrb[0].mxu0 %v602
  %v933 = vpop.f32.mrb[0].mxu0
  %v934 = vadd.f32 %v597, %v933
  %v935 = vpop.f32.mrb[0].mxu0
  %v936 = vadd.f32 %v599, %v935
  %937 = vdwg.mxu0
  %v938 = vld [vmem:[%s5] sm:$0x3]
  %940 = vset.pattern.permute.xlu0 0
  %941 = vperm.xlu0 %940, %v938
  %v942 = vpop.permute.xlu0 %941
  %v944 = vadd.f32 %v863, %v942
  %v945 = vadd.f32 %v865, %v942
  %v946 = vadd.f32 %v934, %v942
  %v947 = vadd.f32 %v936, %v942
  %v952 = vcombine.low %v944, %v945
  %v953 = vcombine.low %v946, %v947
  %v955 = vunpack.c.l.s4 1983009808
  %v956 = vunpack.c.0.s8 %v955
  %v957 = vlaneseq
  %v958 = vshrl.u32 %v957, 7
  %v959 = vsub.s32 %v956, %v958
  %v960 = vrot.slane %v952, %v959
  %v962 = vunpack.c.l.s4 1983009808
  %v963 = vunpack.c.0.s8 %v962
  %v964 = vlaneseq
  %v965 = vshrl.u32 %v964, 7
  %v966 = vsub.s32 %v963, %v965
  %v967 = vrot.slane %v953, %v966
  %v968 = vcombine.low %v960, %v967
  %970 = vst [vmem:[%s6] sm:$0xff] %v968
  // Predicated region
  $region25: #{net_conv_forward.3} parent=0 // pred_check
    _
  $region26: #{net_conv_forward.3} parent=0 // pred_check_branch
    %972 = sbr.rel (0) target = $region28
  $region27: #{net_conv_forward.3} parent=0 // pred_region
    _
  $region28: #{net_conv_forward.3} parent=0 // pred_fallthru
    _
  // Predicated region
  $region29: #{net_conv_forward.3} parent=0 // pred_check
    _
  $region30: #{net_conv_forward.3} parent=0 // pred_check_branch
    %974 = sbr.rel (0) target = $region32
  $region31: #{net_conv_forward.3} parent=0 // pred_region
    _
  $region32: #{net_conv_forward.3} parent=0 // pred_fallthru
    _

</llo_original>
